<compile_context>
chip_gen: v7x
topology: tpu7x:2x2x1
jax: 0.10.0
libtpu: 0.0.40
codegen_flags: <defaults>
</compile_context>

<pallas_src>
import functools

import jax
import jax.numpy as jnp
from jax import lax
from jax.experimental import pallas as pl
from jax.experimental.pallas import tpu as pltpu


def _round_up(x, m):
    return ((x + m - 1) // m) * m


# ------------------------------ Pallas kernel --------------------------------

def _fused_dense_block(x_flat, w1_taps, b1, w2, b2, *, k, Wp, TL, num_t,
                       out_dtype=jnp.float32):
    """x_flat: (B, C_in, Lin) flattened reflection-padded image (+ zero tail).

    Returns (B, C_out, num_t*TL) where flat position q = r*Wp + c holds
    relu(W2 @ relu(conv_k(x)[.., r, c] + b1) + b2).  Columns with c >= Wo and
    positions beyond Ho*Wp are junk and are sliced off by the caller.
    """
    B, C_in, Lin = x_flat.shape
    kk, mid, _ = w1_taps.shape
    c_out = w2.shape[0]
    Lq = num_t * TL

    def kernel(x_ref, w1_ref, b1_ref, w2_ref, b2_ref, o_ref):
        # x_ref: (C_in, Lin) resident padded image for this batch element.
        if num_t == 1:
            base = 0                                        # fully static slices
        else:
            base = pl.multiple_of(pl.program_id(1) * TL, 128)
        acc = jnp.zeros((mid, TL), jnp.float32)
        for dy in range(k):
            for dx in range(k):
                # Tap (dy, dx) of the conv == lane shift by dy*Wp + dx in
                # flattened (padded-width) coordinates.
                xs = x_ref[:, pl.ds(base + dy * Wp + dx, TL)]       # (C_in, TL)
                acc = acc + jnp.dot(w1_ref[dy * k + dx], xs,
                                    preferred_element_type=jnp.float32)
        h = jnp.maximum(acc + b1_ref[...], 0.0)                      # (mid, TL) f32
        h = h.astype(w2_ref.dtype)
        o = jnp.dot(w2_ref[...], h, preferred_element_type=jnp.float32)
        o = jnp.maximum(o + b2_ref[...], 0.0)                        # (c_out, TL)
        o_ref[...] = o.astype(o_ref.dtype)

    itemsize = jnp.dtype(x_flat.dtype).itemsize
    cost = pl.CostEstimate(
        flops=2 * B * Lq * (kk * C_in * mid + mid * c_out),
        transcendentals=0,
        bytes_accessed=(B * C_in * Lin * itemsize
                        + (w1_taps.size + w2.size) * itemsize
                        + (b1.size + b2.size) * 4
                        + B * c_out * Lq * jnp.dtype(out_dtype).itemsize),
    )

    return pl.pallas_call(
        kernel,
        out_shape=jax.ShapeDtypeStruct((B, c_out, Lq), out_dtype),
        grid_spec=pltpu.PrefetchScalarGridSpec(
            num_scalar_prefetch=0,
            grid=(B, num_t),
            in_specs=[
                # Padded image slab: constant over the L axis -> DMA'd once per b.
                pl.BlockSpec((pl.Squeezed(), C_in, Lin), lambda b, t: (b, 0, 0)),
                # Weights / biases: resident in VMEM (constant index maps).
                pl.BlockSpec((kk, mid, C_in), lambda b, t: (0, 0, 0)),
                pl.BlockSpec((mid, 1), lambda b, t: (0, 0)),
                pl.BlockSpec((c_out, mid), lambda b, t: (0, 0)),
                pl.BlockSpec((c_out, 1), lambda b, t: (0, 0)),
            ],
            out_specs=pl.BlockSpec((pl.Squeezed(), c_out, TL),
                                   lambda b, t: (b, 0, t)),
        ),
        compiler_params=pltpu.CompilerParams(
            dimension_semantics=("parallel", "parallel"),
            vmem_limit_bytes=48 * 1024 * 1024),
        cost_estimate=cost,
    )(x_flat, w1_taps, b1, w2, b2)


# ------------------------------ glue (JAX) -----------------------------------

def dense_block_light(x_nchw, params, kernel_size, stride=1,
                      compute_dtype=jnp.float32, tl_max=1024):
    """DenseBlock_light forward: (B, C_in, H, W) -> (B, C_out, H', W')."""
    B, C_in, H, W = x_nchw.shape
    k = kernel_size
    pad = k // 2
    if pad:
        xp = jnp.pad(x_nchw, ((0, 0), (0, 0), (pad, pad), (pad, pad)),
                     mode="reflect")
    else:
        xp = x_nchw
    Hp, Wp = H + 2 * pad, W + 2 * pad
    Ho, Wo = Hp - k + 1, Wp - k + 1        # conv1 is computed at stride 1 in-kernel

    # Flattened-spatial geometry: width = padded Wp so every conv tap is a pure
    # lane shift by dy*Wp + dx; the (Wp - Wo) junk columns per row are sliced off.
    L_valid = Ho * Wp
    TL = min(_round_up(L_valid, 128), _round_up(tl_max, 128))
    num_t = (L_valid + TL - 1) // TL
    Lq = num_t * TL
    max_off = (k - 1) * Wp + (k - 1)
    Lin = _round_up(max(Hp * Wp, Lq + max_off), 128)

    x_flat = xp.reshape(B, C_in, Hp * Wp)
    if Lin > Hp * Wp:
        x_flat = jnp.pad(x_flat, ((0, 0), (0, 0), (0, Lin - Hp * Wp)))
    x_flat = x_flat.astype(compute_dtype)

    w1 = params["w1"]                                        # (mid, C_in, k, k)
    mid = w1.shape[0]
    w1_taps = jnp.transpose(w1, (2, 3, 0, 1)).reshape(k * k, mid, C_in)
    w1_taps = w1_taps.astype(compute_dtype)
    w2 = params["w2"].reshape(params["w2"].shape[0], mid).astype(compute_dtype)
    c_out = w2.shape[0]
    b1 = params["b1"].reshape(mid, 1).astype(jnp.float32)
    b2 = params["b2"].reshape(c_out, 1).astype(jnp.float32)

    out_flat = _fused_dense_block(x_flat, w1_taps, b1, w2, b2,
                                  k=k, Wp=Wp, TL=TL, num_t=num_t)
    out = out_flat[:, :, :L_valid].reshape(B, c_out, Ho, Wp)[:, :, :, :Wo]
    if stride > 1:
        # conv1(stride s) then 1x1 conv2(stride s) == stride-1 compute subsampled by s*s
        # (floor-division nesting makes the output extents match exactly).
        # TODO(synk): drive the L-tile index map over the strided grid inside the kernel
        # instead of computing at full resolution and subsampling here.
        s2 = stride * stride
        out = out[:, :, ::s2, ::s2]
    return out


# -------------------------------- params -------------------------------------

def init_params(key, in_channels, out_channels, kernel_size):
    mid = in_channels // 2
    k1, k2, k3, k4 = jax.random.split(key, 4)
    scale1 = 1.0 / jnp.sqrt(in_channels * kernel_size * kernel_size)
    scale2 = 1.0 / jnp.sqrt(mid * 1 * 1)
    return {
        "w1": jax.random.uniform(k1, (mid, in_channels, kernel_size, kernel_size),
                                 jnp.float32, -scale1, scale1),
        "b1": jax.random.uniform(k2, (mid,), jnp.float32, -scale1, scale1),
        "w2": jax.random.uniform(k3, (out_channels, mid, 1, 1),
                                 jnp.float32, -scale2, scale2),
        "b2": jax.random.uniform(k4, (out_channels,), jnp.float32, -scale2, scale2),
    }


# ------------------------------- reference -----------------------------------

def _ref_conv_layer(x_nchw, w, b, kernel_size, stride):
    pad = kernel_size // 2
    xp = jnp.pad(x_nchw, ((0, 0), (0, 0), (pad, pad), (pad, pad)),
                 mode="reflect") if pad else x_nchw
    out = lax.conv_general_dilated(
        xp, w, window_strides=(stride, stride), padding="VALID",
        dimension_numbers=("NCHW", "OIHW", "NCHW"))
    out = out + b.reshape(1, -1, 1, 1)
    return jnp.maximum(out, 0.0)


def _ref_dense_block(x_nchw, params, kernel_size, stride):
    x = _ref_conv_layer(x_nchw, params["w1"], params["b1"], kernel_size, stride)
    x = _ref_conv_layer(x, params["w2"], params["b2"], 1, stride)
    return x


# --------------------------------- main ---------------------------------------

if __name__ == "__main__":
    # DenseBlock_light(in_channels=4, out_channels=8, kernel_size=3, stride=1)
    B, C_in, H, W = 2, 4, 16, 16
    C_out, ksize, stride = 8, 3, 1

    key = jax.random.PRNGKey(0)
    kx, kp = jax.random.split(key)
    x = jax.random.normal(kx, (B, C_in, H, W), jnp.float32)
    params = init_params(kp, C_in, C_out, ksize)

    ref = _ref_dense_block(x, params, ksize, stride)

    # f32 path: exact-logic check against the XLA conv reference.
    fwd32 = jax.jit(functools.partial(dense_block_light, kernel_size=ksize,
                                      stride=stride, compute_dtype=jnp.float32))
    out32 = jax.block_until_ready(fwd32(x, params))
    assert out32.shape == (B, C_out, H, W), out32.shape
    assert jnp.allclose(out32, ref, atol=1e-4, rtol=1e-4), (
        float(jnp.max(jnp.abs(out32 - ref))))

    # bf16-operand path (v6e/v7x: halves HBM bytes, f32 MXU accumulate).
    # Loose tolerance vs the f32 reference; exactness is established by the f32 run above.
    fwd16 = jax.jit(functools.partial(dense_block_light, kernel_size=ksize,
                                      stride=stride, compute_dtype=jnp.bfloat16))
    out16 = jax.block_until_ready(fwd16(x, params))
    assert out16.shape == (B, C_out, H, W), out16.shape
    assert jnp.allclose(out16, ref, atol=1.5e-1, rtol=1e-1), (
        float(jnp.max(jnp.abs(out16 - ref))))

    print("KERNEL_OK")
</pallas_src>

<mosaic_0001>
module attributes {stable_mosaic.version = 11 : i64} {
  func.func @kernel(%arg0: i32, %arg1: i32, %arg2: memref<1x4x512xf32, #tpu.memory_space<vmem>>, %arg3: memref<9x2x4xf32, #tpu.memory_space<vmem>>, %arg4: memref<2x1xf32, #tpu.memory_space<vmem>>, %arg5: memref<8x2xf32, #tpu.memory_space<vmem>>, %arg6: memref<8x1xf32, #tpu.memory_space<vmem>>, %arg7: memref<1x8x384xf32, #tpu.memory_space<vmem>>) attributes {dimension_semantics = [#tpu.dimension_semantics<parallel>, #tpu.dimension_semantics<parallel>], iteration_bounds = array<i64: 2, 1>, scalar_prefetch = 0 : i64, scratch_operands = 0 : i64, tpu.core_type = #tpu.core_type<tc>, window_params = [{transform_indices = @transform_0, window_bounds = array<i64: 1, 4, 512>}, {pipeline_mode = #tpu.pipeline_mode<synchronous>, transform_indices = @transform_1, window_bounds = array<i64: 9, 2, 4>}, {pipeline_mode = #tpu.pipeline_mode<synchronous>, transform_indices = @transform_2, window_bounds = array<i64: 2, 1>}, {pipeline_mode = #tpu.pipeline_mode<synchronous>, transform_indices = @transform_3, window_bounds = array<i64: 8, 2>}, {pipeline_mode = #tpu.pipeline_mode<synchronous>, transform_indices = @transform_4, window_bounds = array<i64: 8, 1>}, {transform_indices = @transform_5, window_bounds = array<i64: 1, 8, 384>}]} {
    %cst = arith.constant 0.000000e+00 : f32
    %0 = vector.broadcast %cst : f32 to vector<2x384xf32>
    %c0 = arith.constant 0 : index
    %c0_0 = arith.constant 0 : index
    %c0_1 = arith.constant 0 : index
    %1 = vector.load %arg2[%c0, %c0_0, %c0_1] : memref<1x4x512xf32, #tpu.memory_space<vmem>>, vector<1x4x384xf32>
    %2 = vector.shape_cast %1 : vector<1x4x384xf32> to vector<4x384xf32>
    %c0_2 = arith.constant 0 : index
    %c0_3 = arith.constant 0 : index
    %c0_4 = arith.constant 0 : index
    %3 = vector.load %arg3[%c0_2, %c0_3, %c0_4] : memref<9x2x4xf32, #tpu.memory_space<vmem>>, vector<1x2x4xf32>
    %4 = vector.shape_cast %3 : vector<1x2x4xf32> to vector<2x4xf32>
    %cst_5 = arith.constant dense<0.000000e+00> : vector<2x384xf32>
    %5 = tpu.matmul %4, %2, %cst_5 {dimension_numbers = #tpu.dot_dimension_numbers<[1], [0], [0], [1], [0, 0, 1, 1], [], []>} : vector<2x4xf32>, vector<4x384xf32>, vector<2x384xf32> -> vector<2x384xf32>
    %6 = arith.addf %0, %5 : vector<2x384xf32>
    %c0_6 = arith.constant 0 : index
    %c0_7 = arith.constant 0 : index
    %c1 = arith.constant 1 : index
    %7 = vector.load %arg2[%c0_6, %c0_7, %c1] : memref<1x4x512xf32, #tpu.memory_space<vmem>>, vector<1x4x384xf32>
    %8 = vector.shape_cast %7 : vector<1x4x384xf32> to vector<4x384xf32>
    %c1_8 = arith.constant 1 : index
    %c0_9 = arith.constant 0 : index
    %c0_10 = arith.constant 0 : index
    %9 = vector.load %arg3[%c1_8, %c0_9, %c0_10] : memref<9x2x4xf32, #tpu.memory_space<vmem>>, vector<1x2x4xf32>
    %10 = vector.shape_cast %9 : vector<1x2x4xf32> to vector<2x4xf32>
    %cst_11 = arith.constant dense<0.000000e+00> : vector<2x384xf32>
    %11 = tpu.matmul %10, %8, %cst_11 {dimension_numbers = #tpu.dot_dimension_numbers<[1], [0], [0], [1], [0, 0, 1, 1], [], []>} : vector<2x4xf32>, vector<4x384xf32>, vector<2x384xf32> -> vector<2x384xf32>
    %12 = arith.addf %6, %11 : vector<2x384xf32>
    %c0_12 = arith.constant 0 : index
    %c0_13 = arith.constant 0 : index
    %c2 = arith.constant 2 : index
    %13 = vector.load %arg2[%c0_12, %c0_13, %c2] : memref<1x4x512xf32, #tpu.memory_space<vmem>>, vector<1x4x384xf32>
    %14 = vector.shape_cast %13 : vector<1x4x384xf32> to vector<4x384xf32>
    %c2_14 = arith.constant 2 : index
    %c0_15 = arith.constant 0 : index
    %c0_16 = arith.constant 0 : index
    %15 = vector.load %arg3[%c2_14, %c0_15, %c0_16] : memref<9x2x4xf32, #tpu.memory_space<vmem>>, vector<1x2x4xf32>
    %16 = vector.shape_cast %15 : vector<1x2x4xf32> to vector<2x4xf32>
    %cst_17 = arith.constant dense<0.000000e+00> : vector<2x384xf32>
    %17 = tpu.matmul %16, %14, %cst_17 {dimension_numbers = #tpu.dot_dimension_numbers<[1], [0], [0], [1], [0, 0, 1, 1], [], []>} : vector<2x4xf32>, vector<4x384xf32>, vector<2x384xf32> -> vector<2x384xf32>
    %18 = arith.addf %12, %17 : vector<2x384xf32>
    %c0_18 = arith.constant 0 : index
    %c0_19 = arith.constant 0 : index
    %c18 = arith.constant 18 : index
    %19 = vector.load %arg2[%c0_18, %c0_19, %c18] : memref<1x4x512xf32, #tpu.memory_space<vmem>>, vector<1x4x384xf32>
    %20 = vector.shape_cast %19 : vector<1x4x384xf32> to vector<4x384xf32>
    %c3 = arith.constant 3 : index
    %c0_20 = arith.constant 0 : index
    %c0_21 = arith.constant 0 : index
    %21 = vector.load %arg3[%c3, %c0_20, %c0_21] : memref<9x2x4xf32, #tpu.memory_space<vmem>>, vector<1x2x4xf32>
    %22 = vector.shape_cast %21 : vector<1x2x4xf32> to vector<2x4xf32>
    %cst_22 = arith.constant dense<0.000000e+00> : vector<2x384xf32>
    %23 = tpu.matmul %22, %20, %cst_22 {dimension_numbers = #tpu.dot_dimension_numbers<[1], [0], [0], [1], [0, 0, 1, 1], [], []>} : vector<2x4xf32>, vector<4x384xf32>, vector<2x384xf32> -> vector<2x384xf32>
    %24 = arith.addf %18, %23 : vector<2x384xf32>
    %c0_23 = arith.constant 0 : index
    %c0_24 = arith.constant 0 : index
    %c19 = arith.constant 19 : index
    %25 = vector.load %arg2[%c0_23, %c0_24, %c19] : memref<1x4x512xf32, #tpu.memory_space<vmem>>, vector<1x4x384xf32>
    %26 = vector.shape_cast %25 : vector<1x4x384xf32> to vector<4x384xf32>
    %c4 = arith.constant 4 : index
    %c0_25 = arith.constant 0 : index
    %c0_26 = arith.constant 0 : index
    %27 = vector.load %arg3[%c4, %c0_25, %c0_26] : memref<9x2x4xf32, #tpu.memory_space<vmem>>, vector<1x2x4xf32>
    %28 = vector.shape_cast %27 : vector<1x2x4xf32> to vector<2x4xf32>
    %cst_27 = arith.constant dense<0.000000e+00> : vector<2x384xf32>
    %29 = tpu.matmul %28, %26, %cst_27 {dimension_numbers = #tpu.dot_dimension_numbers<[1], [0], [0], [1], [0, 0, 1, 1], [], []>} : vector<2x4xf32>, vector<4x384xf32>, vector<2x384xf32> -> vector<2x384xf32>
    %30 = arith.addf %24, %29 : vector<2x384xf32>
    %c0_28 = arith.constant 0 : index
    %c0_29 = arith.constant 0 : index
    %c20 = arith.constant 20 : index
    %31 = vector.load %arg2[%c0_28, %c0_29, %c20] : memref<1x4x512xf32, #tpu.memory_space<vmem>>, vector<1x4x384xf32>
    %32 = vector.shape_cast %31 : vector<1x4x384xf32> to vector<4x384xf32>
    %c5 = arith.constant 5 : index
    %c0_30 = arith.constant 0 : index
    %c0_31 = arith.constant 0 : index
    %33 = vector.load %arg3[%c5, %c0_30, %c0_31] : memref<9x2x4xf32, #tpu.memory_space<vmem>>, vector<1x2x4xf32>
    %34 = vector.shape_cast %33 : vector<1x2x4xf32> to vector<2x4xf32>
    %cst_32 = arith.constant dense<0.000000e+00> : vector<2x384xf32>
    %35 = tpu.matmul %34, %32, %cst_32 {dimension_numbers = #tpu.dot_dimension_numbers<[1], [0], [0], [1], [0, 0, 1, 1], [], []>} : vector<2x4xf32>, vector<4x384xf32>, vector<2x384xf32> -> vector<2x384xf32>
    %36 = arith.addf %30, %35 : vector<2x384xf32>
    %c0_33 = arith.constant 0 : index
    %c0_34 = arith.constant 0 : index
    %c36 = arith.constant 36 : index
    %37 = vector.load %arg2[%c0_33, %c0_34, %c36] : memref<1x4x512xf32, #tpu.memory_space<vmem>>, vector<1x4x384xf32>
    %38 = vector.shape_cast %37 : vector<1x4x384xf32> to vector<4x384xf32>
    %c6 = arith.constant 6 : index
    %c0_35 = arith.constant 0 : index
    %c0_36 = arith.constant 0 : index
    %39 = vector.load %arg3[%c6, %c0_35, %c0_36] : memref<9x2x4xf32, #tpu.memory_space<vmem>>, vector<1x2x4xf32>
    %40 = vector.shape_cast %39 : vector<1x2x4xf32> to vector<2x4xf32>
    %cst_37 = arith.constant dense<0.000000e+00> : vector<2x384xf32>
    %41 = tpu.matmul %40, %38, %cst_37 {dimension_numbers = #tpu.dot_dimension_numbers<[1], [0], [0], [1], [0, 0, 1, 1], [], []>} : vector<2x4xf32>, vector<4x384xf32>, vector<2x384xf32> -> vector<2x384xf32>
    %42 = arith.addf %36, %41 : vector<2x384xf32>
    %c0_38 = arith.constant 0 : index
    %c0_39 = arith.constant 0 : index
    %c37 = arith.constant 37 : index
    %43 = vector.load %arg2[%c0_38, %c0_39, %c37] : memref<1x4x512xf32, #tpu.memory_space<vmem>>, vector<1x4x384xf32>
    %44 = vector.shape_cast %43 : vector<1x4x384xf32> to vector<4x384xf32>
    %c7 = arith.constant 7 : index
    %c0_40 = arith.constant 0 : index
    %c0_41 = arith.constant 0 : index
    %45 = vector.load %arg3[%c7, %c0_40, %c0_41] : memref<9x2x4xf32, #tpu.memory_space<vmem>>, vector<1x2x4xf32>
    %46 = vector.shape_cast %45 : vector<1x2x4xf32> to vector<2x4xf32>
    %cst_42 = arith.constant dense<0.000000e+00> : vector<2x384xf32>
    %47 = tpu.matmul %46, %44, %cst_42 {dimension_numbers = #tpu.dot_dimension_numbers<[1], [0], [0], [1], [0, 0, 1, 1], [], []>} : vector<2x4xf32>, vector<4x384xf32>, vector<2x384xf32> -> vector<2x384xf32>
    %48 = arith.addf %42, %47 : vector<2x384xf32>
    %c0_43 = arith.constant 0 : index
    %c0_44 = arith.constant 0 : index
    %c38 = arith.constant 38 : index
    %49 = vector.load %arg2[%c0_43, %c0_44, %c38] : memref<1x4x512xf32, #tpu.memory_space<vmem>>, vector<1x4x384xf32>
    %50 = vector.shape_cast %49 : vector<1x4x384xf32> to vector<4x384xf32>
    %c8 = arith.constant 8 : index
    %c0_45 = arith.constant 0 : index
    %c0_46 = arith.constant 0 : index
    %51 = vector.load %arg3[%c8, %c0_45, %c0_46] : memref<9x2x4xf32, #tpu.memory_space<vmem>>, vector<1x2x4xf32>
    %52 = vector.shape_cast %51 : vector<1x2x4xf32> to vector<2x4xf32>
    %cst_47 = arith.constant dense<0.000000e+00> : vector<2x384xf32>
    %53 = tpu.matmul %52, %50, %cst_47 {dimension_numbers = #tpu.dot_dimension_numbers<[1], [0], [0], [1], [0, 0, 1, 1], [], []>} : vector<2x4xf32>, vector<4x384xf32>, vector<2x384xf32> -> vector<2x384xf32>
    %54 = arith.addf %48, %53 : vector<2x384xf32>
    %c0_48 = arith.constant 0 : index
    %c0_49 = arith.constant 0 : index
    %55 = vector.load %arg4[%c0_48, %c0_49] : memref<2x1xf32, #tpu.memory_space<vmem>>, vector<2x1xf32>
    %56 = vector.broadcast %55 : vector<2x1xf32> to vector<2x384xf32>
    %57 = arith.addf %54, %56 : vector<2x384xf32>
    %cst_50 = arith.constant 0.000000e+00 : f32
    %58 = vector.broadcast %cst_50 : f32 to vector<2x384xf32>
    %59 = arith.maximumf %57, %58 : vector<2x384xf32>
    %c0_51 = arith.constant 0 : index
    %c0_52 = arith.constant 0 : index
    %60 = vector.load %arg5[%c0_51, %c0_52] : memref<8x2xf32, #tpu.memory_space<vmem>>, vector<8x2xf32>
    %cst_53 = arith.constant dense<0.000000e+00> : vector<8x384xf32>
    %61 = tpu.matmul %60, %59, %cst_53 {dimension_numbers = #tpu.dot_dimension_numbers<[1], [0], [0], [1], [0, 0, 1, 1], [], []>} : vector<8x2xf32>, vector<2x384xf32>, vector<8x384xf32> -> vector<8x384xf32>
    %c0_54 = arith.constant 0 : index
    %c0_55 = arith.constant 0 : index
    %62 = vector.load %arg6[%c0_54, %c0_55] : memref<8x1xf32, #tpu.memory_space<vmem>>, vector<8x1xf32>
    %63 = vector.broadcast %62 : vector<8x1xf32> to vector<8x384xf32>
    %64 = arith.addf %61, %63 : vector<8x384xf32>
    %cst_56 = arith.constant 0.000000e+00 : f32
    %65 = vector.broadcast %cst_56 : f32 to vector<8x384xf32>
    %66 = arith.maximumf %64, %65 : vector<8x384xf32>
    %c0_57 = arith.constant 0 : index
    %c0_58 = arith.constant 0 : index
    %c0_59 = arith.constant 0 : index
    %67 = vector.load %arg7[%c0_57, %c0_58, %c0_59] : memref<1x8x384xf32, #tpu.memory_space<vmem>>, vector<1x8x384xf32>
    %68 = vector.shape_cast %67 : vector<1x8x384xf32> to vector<8x384xf32>
    %69 = vector.shape_cast %66 : vector<8x384xf32> to vector<1x8x384xf32>
    tpu.vector_store %arg7[%c0_57, %c0_58, %c0_59], %69 {strides = array<i32>} : memref<1x8x384xf32, #tpu.memory_space<vmem>>, vector<1x8x384xf32>,
    return
  }
  func.func @transform_0(%arg0: i32, %arg1: i32) -> (i32, i32, i32) {
    %c0_i32 = arith.constant 0 : i32
    %c0_i32_0 = arith.constant 0 : i32
    %c0_i32_1 = arith.constant 0 : i32
    return %arg0, %c0_i32, %c0_i32_0 : i32, i32, i32
  }
  func.func @transform_1(%arg0: i32, %arg1: i32) -> (i32, i32, i32) {
    %c0_i32 = arith.constant 0 : i32
    %c0_i32_0 = arith.constant 0 : i32
    %c0_i32_1 = arith.constant 0 : i32
    %c0_i32_2 = arith.constant 0 : i32
    return %c0_i32, %c0_i32_0, %c0_i32_1 : i32, i32, i32
  }
  func.func @transform_2(%arg0: i32, %arg1: i32) -> (i32, i32) {
    %c0_i32 = arith.constant 0 : i32
    %c0_i32_0 = arith.constant 0 : i32
    %c0_i32_1 = arith.constant 0 : i32
    return %c0_i32, %c0_i32_0 : i32, i32
  }
  func.func @transform_3(%arg0: i32, %arg1: i32) -> (i32, i32) {
    %c0_i32 = arith.constant 0 : i32
    %c0_i32_0 = arith.constant 0 : i32
    %c0_i32_1 = arith.constant 0 : i32
    return %c0_i32, %c0_i32_0 : i32, i32
  }
  func.func @transform_4(%arg0: i32, %arg1: i32) -> (i32, i32) {
    %c0_i32 = arith.constant 0 : i32
    %c0_i32_0 = arith.constant 0 : i32
    %c0_i32_1 = arith.constant 0 : i32
    return %c0_i32, %c0_i32_0 : i32, i32
  }
  func.func @transform_5(%arg0: i32, %arg1: i32) -> (i32, i32, i32) {
    %c0_i32 = arith.constant 0 : i32
    %c0_i32_0 = arith.constant 0 : i32
    return %arg0, %c0_i32, %arg1 : i32, i32, i32
  }
}

</mosaic_0001>

<llo_original>
// kernel: dense_block_light.1
$region0: #{dense_block_light.1}
  #allocation0 [shape = 'u32[]', space=smem, size = 0x4, offset = 0x4, fixed_abs, tag = 'smem constant byte address 0x4 - core index']
  #allocation1 [shape = 'u32[144,128]{1,0:T(1,128)}', space=vmem, size = 0x12000, scoped, tag = 'internal scratch']
  %s0 = inlined_call_operand.vmem [shape: f32[2,4,512], index: 0, kind: input, shape index: {}]
  %s1 = inlined_call_operand.vmem [shape: f32[9,2,4], index: 1, kind: input, shape index: {}]
  %s2 = inlined_call_operand.vmem [shape: f32[2,1], index: 2, kind: input, shape index: {}]
  %s3 = inlined_call_operand.vmem [shape: f32[8,2], index: 3, kind: input, shape index: {}]
  %s4 = inlined_call_operand.vmem [shape: f32[8,1], index: 4, kind: input, shape index: {}]
  %s5 = inlined_call_operand.vmem [shape: f32[2,8,384], index: 5, kind: output, shape index: {}]
  %s6 = sld [smem:[#allocation0]]
  $region53: #{dense_block_light.1} parent=0
    _
  %s8 = ssub.s32 1, %s6
  %s9 = scalar_select 0, %s8, %s6
  loop: start=0, step=1, limit=4
  $region2: #{dense_block_light.1} parent=0 // loop_pre_header
    _
  $region3: #{dense_block_light.1} parent=0 // loop_header
    %s11 = sphi 0, %s15
    %p12 = scmp.ge.s32.totalorder %s11, 4
    %s18 = sphi 0, %s30
    %s19 = sphi 0, %s26
    %s20 = sphi 0, %s18
    %s21 = sphi 0, %s19
    %s22 = sphi 0, %s20
    %s23 = sphi 0, %s21
    %s33 = sphi 0, %s35
    %s36 = sphi 0, %s33
    %s37 = sphi 0, %s36
    %s53 = sphi 0, %s37
    %s57 = sphi 0, %s57
    %s59 = sphi 0, %s57
    %s60 = sphi 0, %s59
    %s74 = sphi 0, %s60
    %s78 = sphi 0, %s78
    %s80 = sphi 0, %s78
    %s81 = sphi 0, %s80
    %s95 = sphi 0, %s81
    %s99 = sphi 0, %s99
    %s101 = sphi 0, %s99
    %s102 = sphi 0, %s101
    %s116 = sphi 0, %s102
    %s120 = sphi 0, %s120
    %s122 = sphi 0, %s120
    %s123 = sphi 0, %s122
    %s137 = sphi 0, %s123
    %s145 = sphi 0, %s147
    %s148 = sphi 0, %s145
    %s149 = sphi 0, %s148
    %s165 = sphi 0, %s149
  $region4: #{dense_block_light.1} parent=0 // loop_header_branch
    %14 = sbr.rel (%p12) target = $region8
  $region5: #{dense_block_light.1} parent=0 // loop_body
    %s16 = ssub.s32 %s11, 1
    %s17 = ssub.s32 %s11, 2
    %s24 = sadd.s32 1, %s19
    %p25 = scmp.ge.s32.totalorder %s24, 1
    %s26 = scalar_select %p25, 0, %s24
    %s27 = sadd.s32 1, %s18
    %s28 = scalar_select %p25, %s27, %s18
    %p29 = scmp.ge.s32.totalorder %s28, 2
    %s30 = scalar_select %p29, 0, %s28
    %s31 = ssub.s32 %s18, %s30
    %p32 = scmp.eq.s32.totalorder %s31, 0
    %s34 = sadd.s32 %s33, 1
    %s35 = scalar_select %p32, %s33, %s34
    %p38 = pneg %p32
    %p39 = scmp.eq.s32.totalorder %s11, 1
    %p40 = por %p38, %p39
    %p41 = scmp.ne.s32.totalorder %s33, %s36
    %p42 = scmp.eq.s32.totalorder %s11, 0
    %p43 = por %p41, %p42
    %p44 = scmp.ne.s32.totalorder %s33, %s36
    %p45 = scmp.eq.s32.totalorder %s16, 1
    %p46 = por %p44, %p45
    %p47 = scmp.ne.s32.totalorder %s36, %s37
    %p48 = scmp.eq.s32.totalorder %s16, 0
    %p49 = por %p47, %p48
    %p50 = scmp.ne.s32.totalorder %s36, %s37
    %p51 = scmp.eq.s32.totalorder %s17, 1
    %p52 = por %p50, %p51
    %p54 = scmp.ne.s32.totalorder %s37, %s53
    %p55 = scmp.eq.s32.totalorder %s17, 0
    %p56 = por %p54, %p55
    %s58 = sadd.s32 %s57, 1
    %p61 = scmp.eq.s32.totalorder %s11, 1
    %p62 = scmp.ne.s32.totalorder %s57, %s59
    %p63 = scmp.eq.s32.totalorder %s11, 0
    %p64 = por %p62, %p63
    %p65 = scmp.ne.s32.totalorder %s57, %s59
    %p66 = scmp.eq.s32.totalorder %s16, 1
    %p67 = por %p65, %p66
    %p68 = scmp.ne.s32.totalorder %s59, %s60
    %p69 = scmp.eq.s32.totalorder %s16, 0
    %p70 = por %p68, %p69
    %p71 = scmp.ne.s32.totalorder %s59, %s60
    %p72 = scmp.eq.s32.totalorder %s17, 1
    %p73 = por %p71, %p72
    %p75 = scmp.ne.s32.totalorder %s60, %s74
    %p76 = scmp.eq.s32.totalorder %s17, 0
    %p77 = por %p75, %p76
    %s79 = sadd.s32 %s78, 1
    %p82 = scmp.eq.s32.totalorder %s11, 1
    %p83 = scmp.ne.s32.totalorder %s78, %s80
    %p84 = scmp.eq.s32.totalorder %s11, 0
    %p85 = por %p83, %p84
    %p86 = scmp.ne.s32.totalorder %s78, %s80
    %p87 = scmp.eq.s32.totalorder %s16, 1
    %p88 = por %p86, %p87
    %p89 = scmp.ne.s32.totalorder %s80, %s81
    %p90 = scmp.eq.s32.totalorder %s16, 0
    %p91 = por %p89, %p90
    %p92 = scmp.ne.s32.totalorder %s80, %s81
    %p93 = scmp.eq.s32.totalorder %s17, 1
    %p94 = por %p92, %p93
    %p96 = scmp.ne.s32.totalorder %s81, %s95
    %p97 = scmp.eq.s32.totalorder %s17, 0
    %p98 = por %p96, %p97
    %s100 = sadd.s32 %s99, 1
    %p103 = scmp.eq.s32.totalorder %s11, 1
    %p104 = scmp.ne.s32.totalorder %s99, %s101
    %p105 = scmp.eq.s32.totalorder %s11, 0
    %p106 = por %p104, %p105
    %p107 = scmp.ne.s32.totalorder %s99, %s101
    %p108 = scmp.eq.s32.totalorder %s16, 1
    %p109 = por %p107, %p108
    %p110 = scmp.ne.s32.totalorder %s101, %s102
    %p111 = scmp.eq.s32.totalorder %s16, 0
    %p112 = por %p110, %p111
    %p113 = scmp.ne.s32.totalorder %s101, %s102
    %p114 = scmp.eq.s32.totalorder %s17, 1
    %p115 = por %p113, %p114
    %p117 = scmp.ne.s32.totalorder %s102, %s116
    %p118 = scmp.eq.s32.totalorder %s17, 0
    %p119 = por %p117, %p118
    %s121 = sadd.s32 %s120, 1
    %p124 = scmp.eq.s32.totalorder %s11, 1
    %p125 = scmp.ne.s32.totalorder %s120, %s122
    %p126 = scmp.eq.s32.totalorder %s11, 0
    %p127 = por %p125, %p126
    %p128 = scmp.ne.s32.totalorder %s120, %s122
    %p129 = scmp.eq.s32.totalorder %s16, 1
    %p130 = por %p128, %p129
    %p131 = scmp.ne.s32.totalorder %s122, %s123
    %p132 = scmp.eq.s32.totalorder %s16, 0
    %p133 = por %p131, %p132
    %p134 = scmp.ne.s32.totalorder %s122, %s123
    %p135 = scmp.eq.s32.totalorder %s17, 1
    %p136 = por %p134, %p135
    %p138 = scmp.ne.s32.totalorder %s123, %s137
    %p139 = scmp.eq.s32.totalorder %s17, 0
    %p140 = por %p138, %p139
    %s141 = ssub.s32 %s18, %s30
    %s142 = ssub.s32 %s19, %s26
    %s143 = sor.u32 %s141, %s142
    %p144 = scmp.eq.s32.totalorder %s143, 0
    %s146 = sadd.s32 %s145, 1
    %s147 = scalar_select %p144, %s145, %s146
    %p150 = pneg %p144
    %p151 = scmp.eq.s32.totalorder %s11, 1
    %p152 = por %p150, %p151
    %p153 = scmp.ne.s32.totalorder %s145, %s148
    %p154 = scmp.eq.s32.totalorder %s11, 0
    %p155 = por %p153, %p154
    %p156 = scmp.ne.s32.totalorder %s145, %s148
    %p157 = scmp.eq.s32.totalorder %s16, 1
    %p158 = por %p156, %p157
    %p159 = scmp.ne.s32.totalorder %s148, %s149
    %p160 = scmp.eq.s32.totalorder %s16, 0
    %p161 = por %p159, %p160
    %p162 = scmp.ne.s32.totalorder %s148, %s149
    %p163 = scmp.eq.s32.totalorder %s17, 1
    %p164 = por %p162, %p163
    %p166 = scmp.ne.s32.totalorder %s149, %s165
    %p167 = scmp.eq.s32.totalorder %s17, 0
    %p168 = por %p166, %p167
    %p169 = scmp.le.s32.totalorder 1, %s11
    %p170 = scmp.lt.s32.totalorder %s11, 3
    %p171 = pnand %p169, %p170
    %p172 = pneg %p171
    // Predicated region
    $region9: #{dense_block_light.1} parent=5 // pred_check
      _
    $region10: #{dense_block_light.1} parent=5 // pred_check_branch
      %174 = sbr.rel (%p171) target = $region12
    $region11: #{dense_block_light.1} parent=5 // pred_region
      %s175 = ssub.s32 %s11, 1
      // Predicated region
      $region13: #{dense_block_light.1} parent=11 // pred_check
        %p176 = pneg %p70
      $region14: #{dense_block_light.1} parent=11 // pred_check_branch
        %178 = sbr.rel (%p176) target = $region16
      $region15: #{dense_block_light.1} parent=11 // pred_region
        _
      $region16: #{dense_block_light.1} parent=11 // pred_fallthru
        _
      // Predicated region
      $region17: #{dense_block_light.1} parent=11 // pred_check
        %p179 = pneg %p91
      $region18: #{dense_block_light.1} parent=11 // pred_check_branch
        %181 = sbr.rel (%p179) target = $region20
      $region19: #{dense_block_light.1} parent=11 // pred_region
        _
      $region20: #{dense_block_light.1} parent=11 // pred_fallthru
        _
      // Predicated region
      $region21: #{dense_block_light.1} parent=11 // pred_check
        %p182 = pneg %p112
      $region22: #{dense_block_light.1} parent=11 // pred_check_branch
        %184 = sbr.rel (%p182) target = $region24
      $region23: #{dense_block_light.1} parent=11 // pred_region
        _
      $region24: #{dense_block_light.1} parent=11 // pred_fallthru
        _
      // Predicated region
      $region25: #{dense_block_light.1} parent=11 // pred_check
        %p185 = pneg %p133
      $region26: #{dense_block_light.1} parent=11 // pred_check_branch
        %187 = sbr.rel (%p185) target = $region28
      $region27: #{dense_block_light.1} parent=11 // pred_region
        _
      $region28: #{dense_block_light.1} parent=11 // pred_fallthru
        _
    $region12: #{dense_block_light.1} parent=5 // pred_fallthru
      _
    %p188 = scmp.lt.s32.totalorder %s11, 2
    // Predicated region
    $region29: #{dense_block_light.1} parent=5 // pred_check
      %p189 = pneg %p188
    $region30: #{dense_block_light.1} parent=5 // pred_check_branch
      %191 = sbr.rel (%p189) target = $region32
    $region31: #{dense_block_light.1} parent=5 // pred_region
      // Predicated region
      $region33: #{dense_block_light.1} parent=31 // pred_check
        %p192 = pneg %p43
      $region34: #{dense_block_light.1} parent=31 // pred_check_branch
        %194 = sbr.rel (%p192) target = $region36
      $region35: #{dense_block_light.1} parent=31 // pred_region
        %p195 = scmp.lt.s32.totalorder %s18, 1
        %s196 = scalar_select %p195, %s18, 1
        %s197 = smul.addr %s196, 4
        %s198 = smul.addr %s197, 4
        %s199 = scalar_lea.vmem %s0, %s198
      $region36: #{dense_block_light.1} parent=31 // pred_fallthru
        _
    $region32: #{dense_block_light.1} parent=5 // pred_fallthru
      _
    %p200 = scmp.le.s32.totalorder 1, %s11
    %p201 = scmp.lt.s32.totalorder %s11, 3
    %p202 = pnand %p200, %p201
    %p203 = pneg %p202
    // Predicated region
    $region37: #{dense_block_light.1} parent=5 // pred_check
      _
    $region38: #{dense_block_light.1} parent=5 // pred_check_branch
      %205 = sbr.rel (%p202) target = $region40
    $region39: #{dense_block_light.1} parent=5 // pred_region
      %s206 = ssub.s32 %s11, 1
      %p207 = scmp.lt.s32.totalorder %s20, 1
      %s208 = scalar_select %p207, %s20, 1
      %s209 = smul.addr %s208, 4
      %s210 = smul.addr %s209, 4
      %s211 = scalar_lea.vmem %s0, %s210
      %p212 = pneg %p49
      %p213 = pneg %p46
      %p214 = pneg %p70
      %p215 = pneg %p67
      %p216 = pneg %p91
      %p217 = pneg %p88
      %p218 = pneg %p112
      %p219 = pneg %p109
      %p220 = pneg %p133
      %p221 = pneg %p130
      %p222 = pneg %p161
      %p223 = pneg %p158
      %s224 = smul.u32 3, %s21
      %p225 = scmp.lt.s32.totalorder %s20, 1
      %s226 = scalar_select %p225, %s20, 1
      %p227 = scmp.lt.s32.totalorder %s224, 2
      %s228 = scalar_select %p227, %s224, 2
      %s229 = smul.addr %s226, 3
      %s230 = sadd.s32 %s228, %s229
      %s231 = smul.addr %s230, 8
      %s232 = scalar_lea.vmem %s5, %s231
      %p233 = scmp.lt.s32.totalorder %s20, 1
      %s234 = scalar_select %p233, %s20, 1
      %s235 = smul.addr %s234, 4
      %s236 = smul.addr %s235, 4
      %s237 = scalar_lea.vmem %s0, %s236
      %s238 = smul.u32 3, %s21
      %p239 = scmp.lt.s32.totalorder %s20, 1
      %s240 = scalar_select %p239, %s20, 1
      %p241 = scmp.lt.s32.totalorder %s238, 2
      %s242 = scalar_select %p241, %s238, 2
      %s243 = smul.addr %s240, 3
      %s244 = sadd.s32 %s242, %s243
      %s245 = smul.addr %s244, 8
      %s246 = scalar_lea.vmem %s5, %s245
      %s247 = smul.u32 3, %s21
      %v248 = vld [vmem:[%s237] sm:$0xff]
      %v249 = vld [vmem:[%s237 + $0x8] sm:$0xf]
      %v250 = vld [vmem:[%s1] sm:$0x3]
      %v251 = vld [vmem:[%s237] sm:$0xff]
      %v252 = vld [vmem:[%s237 + $0x8] sm:$0xff]
      %s253 = scalar_lea.vmem %s1, 2
      %v254 = vld [vmem:[%s253] sm:$0x3]
      %v257 = vcombine.high %v251, %v251
      %v258 = vcombine.high %v252, %v252
      %259 = vrot.lane.b32.xlu0 %v251, 127
      %v260 = vpop.permute.xlu0 %259
      %261 = vrot.lane.b32.xlu0 %v257, 127
      %v262 = vpop.permute.xlu0 %261
      %263 = vrot.lane.b32.xlu0 %v252, 127
      %v264 = vpop.permute.xlu0 %263
      %265 = vrot.lane.b32.xlu0 %v258, 127
      %v266 = vpop.permute.xlu0 %265
      %vm267 = vcmask 1039360
      %v268 = vsel %vm267, %v260, %v262
      %v269 = vsel %vm267, %v262, %v264
      %v270 = vsel %vm267, %v264, %v266
      %vm271 = vcmask 31744
      %v273 = vsel %vm271, %v254, 0
      %vm275 = vcmask 1043456
      %v276 = vsel %vm275, %v268, 0
      %v278 = vsel %vm275, %v269, 0
      %v280 = vsel %vm275, %v270, 0
      %282 = vmatprep.subr.mxu0 %v278
      %283 = vmatpush1.msra.mxu0 %v276
      %284 = vmatprep.subr.mxu0 0.0
      %285 = vmatpush1.msra.mxu0 0.0
      %286 = vmatprep.subr.mxu0 0.0
      %287 = vmatpush1.msra.mxu0 0.0
      %288 = vmatprep.subr.mxu0 0.0
      %289 = vmatpush1.msra.mxu0 0.0
      %290 = vmatprep.subr.mxu0 0.0
      %291 = vmatpush1.msra.mxu0 0.0
      %292 = vmatprep.subr.mxu0 0.0
      %293 = vmatpush1.msra.mxu0 0.0
      %294 = vmatprep.subr.mxu0 0.0
      %295 = vmatpush1.msra.mxu0 0.0
      %296 = vmatprep.subr.mxu0 0.0
      %297 = vmatpush1.msra.mxu0 0.0
      %298 = vmatprep.subr.mxu0 0.0
      %299 = vmatpush1.msra.mxu0 0.0
      %300 = vmatprep.subr.mxu0 0.0
      %301 = vmatpush1.msra.mxu0 0.0
      %302 = vmatprep.subr.mxu0 0.0
      %303 = vmatpush1.msra.mxu0 0.0
      %304 = vmatprep.subr.mxu0 0.0
      %305 = vmatpush1.msra.mxu0 0.0
      %306 = vmatprep.subr.mxu0 0.0
      %307 = vmatpush1.msra.mxu0 0.0
      %308 = vmatprep.subr.mxu0 0.0
      %309 = vmatpush1.msra.mxu0 0.0
      %310 = vmatprep.subr.mxu0 0.0
      %311 = vmatpush1.msra.mxu0 0.0
      %312 = vmatprep.subr.mxu0 0.0
      %313 = vmatpush1.msra.mxu0 0.0
      %314 = vmatprep.subr.mxu0 0.0
      %315 = vmatpush1.msra.mxu0 0.0
      %316 = vmatprep.subr.mxu0 0.0
      %317 = vmatpush1.msra.mxu0 0.0
      %318 = vmatprep.subr.mxu0 0.0
      %319 = vmatpush1.msra.mxu0 0.0
      %320 = vmatprep.subr.mxu0 0.0
      %321 = vmatpush1.msra.mxu0 0.0
      %322 = vmatprep.subr.mxu0 0.0
      %323 = vmatpush1.msra.mxu0 0.0
      %324 = vmatprep.subr.mxu0 0.0
      %325 = vmatpush1.msra.mxu0 0.0
      %326 = vmatprep.subr.mxu0 0.0
      %327 = vmatpush1.msra.mxu0 0.0
      %328 = vmatprep.subr.mxu0 0.0
      %329 = vmatpush1.msra.mxu0 0.0
      %330 = vmatprep.subr.mxu0 0.0
      %331 = vmatpush1.msra.mxu0 0.0
      %332 = vmatprep.subr.mxu0 0.0
      %333 = vmatpush1.msra.mxu0 0.0
      %334 = vmatprep.subr.mxu0 0.0
      %335 = vmatpush1.msra.mxu0 0.0
      %336 = vmatprep.subr.mxu0 0.0
      %337 = vmatpush1.msra.mxu0 0.0
      %338 = vmatprep.subr.mxu0 0.0
      %339 = vmatpush1.msra.mxu0 0.0
      %340 = vmatprep.subr.mxu0 0.0
      %341 = vmatpush1.msra.mxu0 0.0
      %342 = vmatprep.subr.mxu0 0.0
      %343 = vmatpush1.msra.mxu0 0.0
      %344 = vmatprep.subr.mxu0 0.0
      %345 = vmatpush1.msra.mxu0 0.0
      %346 = vmatprep.mubr.f32.mxu0 0.0
      %347 = vmatmul.mubr.f32.gmra.mrb[0].mxu0 %v273
      %v348 = vpop.f32.mrb[0].mxu0
      %v349 = vadd.f32 0.0, %v348
      %v350 = vpop.f32.mrb[0].mxu0
      %v351 = vadd.f32 0.0, %v350
      %352 = vdwg.mxu0
      %353 = vmatprep.subr.mxu0 0.0
      %354 = vmatpush1.msra.mxu0 %v280
      %355 = vmatprep.subr.mxu0 0.0
      %356 = vmatpush1.msra.mxu0 0.0
      %357 = vmatprep.subr.mxu0 0.0
      %358 = vmatpush1.msra.mxu0 0.0
      %359 = vmatprep.subr.mxu0 0.0
      %360 = vmatpush1.msra.mxu0 0.0
      %361 = vmatprep.subr.mxu0 0.0
      %362 = vmatpush1.msra.mxu0 0.0
      %363 = vmatprep.subr.mxu0 0.0
      %364 = vmatpush1.msra.mxu0 0.0
      %365 = vmatprep.subr.mxu0 0.0
      %366 = vmatpush1.msra.mxu0 0.0
      %367 = vmatprep.subr.mxu0 0.0
      %368 = vmatpush1.msra.mxu0 0.0
      %369 = vmatprep.subr.mxu0 0.0
      %370 = vmatpush1.msra.mxu0 0.0
      %371 = vmatprep.subr.mxu0 0.0
      %372 = vmatpush1.msra.mxu0 0.0
      %373 = vmatprep.subr.mxu0 0.0
      %374 = vmatpush1.msra.mxu0 0.0
      %375 = vmatprep.subr.mxu0 0.0
      %376 = vmatpush1.msra.mxu0 0.0
      %377 = vmatprep.subr.mxu0 0.0
      %378 = vmatpush1.msra.mxu0 0.0
      %379 = vmatprep.subr.mxu0 0.0
      %380 = vmatpush1.msra.mxu0 0.0
      %381 = vmatprep.subr.mxu0 0.0
      %382 = vmatpush1.msra.mxu0 0.0
      %383 = vmatprep.subr.mxu0 0.0
      %384 = vmatpush1.msra.mxu0 0.0
      %385 = vmatprep.subr.mxu0 0.0
      %386 = vmatpush1.msra.mxu0 0.0
      %387 = vmatprep.subr.mxu0 0.0
      %388 = vmatpush1.msra.mxu0 0.0
      %389 = vmatprep.subr.mxu0 0.0
      %390 = vmatpush1.msra.mxu0 0.0
      %391 = vmatprep.subr.mxu0 0.0
      %392 = vmatpush1.msra.mxu0 0.0
      %393 = vmatprep.subr.mxu0 0.0
      %394 = vmatpush1.msra.mxu0 0.0
      %395 = vmatprep.subr.mxu0 0.0
      %396 = vmatpush1.msra.mxu0 0.0
      %397 = vmatprep.subr.mxu0 0.0
      %398 = vmatpush1.msra.mxu0 0.0
      %399 = vmatprep.subr.mxu0 0.0
      %400 = vmatpush1.msra.mxu0 0.0
      %401 = vmatprep.subr.mxu0 0.0
      %402 = vmatpush1.msra.mxu0 0.0
      %403 = vmatprep.subr.mxu0 0.0
      %404 = vmatpush1.msra.mxu0 0.0
      %405 = vmatprep.subr.mxu0 0.0
      %406 = vmatpush1.msra.mxu0 0.0
      %407 = vmatprep.subr.mxu0 0.0
      %408 = vmatpush1.msra.mxu0 0.0
      %409 = vmatprep.subr.mxu0 0.0
      %410 = vmatpush1.msra.mxu0 0.0
      %411 = vmatprep.subr.mxu0 0.0
      %412 = vmatpush1.msra.mxu0 0.0
      %413 = vmatprep.subr.mxu0 0.0
      %414 = vmatpush1.msra.mxu0 0.0
      %415 = vmatprep.subr.mxu0 0.0
      %416 = vmatpush1.msra.mxu0 0.0
      %417 = vmatprep.mubr.f32.mxu0 0.0
      %418 = vmatmul.mubr.f32.gmra.mrb[0].mxu0 %v273
      %v419 = vpop.f32.mrb[0].mxu0
      %v420 = vadd.f32 0.0, %v419
      %v421 = vpop.f32.mrb[0].mxu0
      %422 = vdwg.mxu0
      %v425 = vcombine.high %v248, %v248
      %v427 = vsel %vm271, %v250, 0
      %v429 = vsel %vm275, %v248, 0
      %v431 = vsel %vm275, %v425, 0
      %v433 = vsel %vm275, %v249, 0
      %435 = vmatprep.subr.mxu0 %v431
      %436 = vmatpush1.msra.mxu0 %v429
      %437 = vmatprep.subr.mxu0 0.0
      %438 = vmatpush1.msra.mxu0 0.0
      %439 = vmatprep.subr.mxu0 0.0
      %440 = vmatpush1.msra.mxu0 0.0
      %441 = vmatprep.subr.mxu0 0.0
      %442 = vmatpush1.msra.mxu0 0.0
      %443 = vmatprep.subr.mxu0 0.0
      %444 = vmatpush1.msra.mxu0 0.0
      %445 = vmatprep.subr.mxu0 0.0
      %446 = vmatpush1.msra.mxu0 0.0
      %447 = vmatprep.subr.mxu0 0.0
      %448 = vmatpush1.msra.mxu0 0.0
      %449 = vmatprep.subr.mxu0 0.0
      %450 = vmatpush1.msra.mxu0 0.0
      %451 = vmatprep.subr.mxu0 0.0
      %452 = vmatpush1.msra.mxu0 0.0
      %453 = vmatprep.subr.mxu0 0.0
      %454 = vmatpush1.msra.mxu0 0.0
      %455 = vmatprep.subr.mxu0 0.0
      %456 = vmatpush1.msra.mxu0 0.0
      %457 = vmatprep.subr.mxu0 0.0
      %458 = vmatpush1.msra.mxu0 0.0
      %459 = vmatprep.subr.mxu0 0.0
      %460 = vmatpush1.msra.mxu0 0.0
      %461 = vmatprep.subr.mxu0 0.0
      %462 = vmatpush1.msra.mxu0 0.0
      %463 = vmatprep.subr.mxu0 0.0
      %464 = vmatpush1.msra.mxu0 0.0
      %465 = vmatprep.subr.mxu0 0.0
      %466 = vmatpush1.msra.mxu0 0.0
      %467 = vmatprep.subr.mxu0 0.0
      %468 = vmatpush1.msra.mxu0 0.0
      %469 = vmatprep.subr.mxu0 0.0
      %470 = vmatpush1.msra.mxu0 0.0
      %471 = vmatprep.subr.mxu0 0.0
      %472 = vmatpush1.msra.mxu0 0.0
      %473 = vmatprep.subr.mxu0 0.0
      %474 = vmatpush1.msra.mxu0 0.0
      %475 = vmatprep.subr.mxu0 0.0
      %476 = vmatpush1.msra.mxu0 0.0
      %477 = vmatprep.subr.mxu0 0.0
      %478 = vmatpush1.msra.mxu0 0.0
      %479 = vmatprep.subr.mxu0 0.0
      %480 = vmatpush1.msra.mxu0 0.0
      %481 = vmatprep.subr.mxu0 0.0
      %482 = vmatpush1.msra.mxu0 0.0
      %483 = vmatprep.subr.mxu0 0.0
      %484 = vmatpush1.msra.mxu0 0.0
      %485 = vmatprep.subr.mxu0 0.0
      %486 = vmatpush1.msra.mxu0 0.0
      %487 = vmatprep.subr.mxu0 0.0
      %488 = vmatpush1.msra.mxu0 0.0
      %489 = vmatprep.subr.mxu0 0.0
      %490 = vmatpush1.msra.mxu0 0.0
      %491 = vmatprep.subr.mxu0 0.0
      %492 = vmatpush1.msra.mxu0 0.0
      %493 = vmatprep.subr.mxu0 0.0
      %494 = vmatpush1.msra.mxu0 0.0
      %495 = vmatprep.subr.mxu0 0.0
      %496 = vmatpush1.msra.mxu0 0.0
      %497 = vmatprep.subr.mxu0 0.0
      %498 = vmatpush1.msra.mxu0 0.0
      %499 = vmatprep.mubr.f32.mxu0 0.0
      %500 = vmatmul.mubr.f32.gmra.mrb[0].mxu0 %v427
      %v501 = vpop.f32.mrb[0].mxu0
      %v502 = vadd.f32 %v349, %v501
      %v503 = vpop.f32.mrb[0].mxu0
      %v504 = vadd.f32 %v351, %v503
      %505 = vdwg.mxu0
      %506 = vmatprep.subr.mxu0 0.0
      %507 = vmatpush1.msra.mxu0 %v433
      %508 = vmatprep.subr.mxu0 0.0
      %509 = vmatpush1.msra.mxu0 0.0
      %510 = vmatprep.subr.mxu0 0.0
      %511 = vmatpush1.msra.mxu0 0.0
      %512 = vmatprep.subr.mxu0 0.0
      %513 = vmatpush1.msra.mxu0 0.0
      %514 = vmatprep.subr.mxu0 0.0
      %515 = vmatpush1.msra.mxu0 0.0
      %516 = vmatprep.subr.mxu0 0.0
      %517 = vmatpush1.msra.mxu0 0.0
      %518 = vmatprep.subr.mxu0 0.0
      %519 = vmatpush1.msra.mxu0 0.0
      %520 = vmatprep.subr.mxu0 0.0
      %521 = vmatpush1.msra.mxu0 0.0
      %522 = vmatprep.subr.mxu0 0.0
      %523 = vmatpush1.msra.mxu0 0.0
      %524 = vmatprep.subr.mxu0 0.0
      %525 = vmatpush1.msra.mxu0 0.0
      %526 = vmatprep.subr.mxu0 0.0
      %527 = vmatpush1.msra.mxu0 0.0
      %528 = vmatprep.subr.mxu0 0.0
      %529 = vmatpush1.msra.mxu0 0.0
      %530 = vmatprep.subr.mxu0 0.0
      %531 = vmatpush1.msra.mxu0 0.0
      %532 = vmatprep.subr.mxu0 0.0
      %533 = vmatpush1.msra.mxu0 0.0
      %534 = vmatprep.subr.mxu0 0.0
      %535 = vmatpush1.msra.mxu0 0.0
      %536 = vmatprep.subr.mxu0 0.0
      %537 = vmatpush1.msra.mxu0 0.0
      %538 = vmatprep.subr.mxu0 0.0
      %539 = vmatpush1.msra.mxu0 0.0
      %540 = vmatprep.subr.mxu0 0.0
      %541 = vmatpush1.msra.mxu0 0.0
      %542 = vmatprep.subr.mxu0 0.0
      %543 = vmatpush1.msra.mxu0 0.0
      %544 = vmatprep.subr.mxu0 0.0
      %545 = vmatpush1.msra.mxu0 0.0
      %546 = vmatprep.subr.mxu0 0.0
      %547 = vmatpush1.msra.mxu0 0.0
      %548 = vmatprep.subr.mxu0 0.0
      %549 = vmatpush1.msra.mxu0 0.0
      %550 = vmatprep.subr.mxu0 0.0
      %551 = vmatpush1.msra.mxu0 0.0
      %552 = vmatprep.subr.mxu0 0.0
      %553 = vmatpush1.msra.mxu0 0.0
      %554 = vmatprep.subr.mxu0 0.0
      %555 = vmatpush1.msra.mxu0 0.0
      %556 = vmatprep.subr.mxu0 0.0
      %557 = vmatpush1.msra.mxu0 0.0
      %558 = vmatprep.subr.mxu0 0.0
      %559 = vmatpush1.msra.mxu0 0.0
      %560 = vmatprep.subr.mxu0 0.0
      %561 = vmatpush1.msra.mxu0 0.0
      %562 = vmatprep.subr.mxu0 0.0
      %563 = vmatpush1.msra.mxu0 0.0
      %564 = vmatprep.subr.mxu0 0.0
      %565 = vmatpush1.msra.mxu0 0.0
      %566 = vmatprep.subr.mxu0 0.0
      %567 = vmatpush1.msra.mxu0 0.0
      %568 = vmatprep.subr.mxu0 0.0
      %569 = vmatpush1.msra.mxu0 0.0
      %570 = vmatprep.mubr.f32.mxu0 0.0
      %571 = vmatmul.mubr.f32.gmra.mrb[0].mxu0 %v427
      %v572 = vpop.f32.mrb[0].mxu0
      %v573 = vadd.f32 %v420, %v572
      %v574 = vpop.f32.mrb[0].mxu0
      %575 = vdwg.mxu0
      %v576 = vld [vmem:[%s237] sm:$0xff]
      %v577 = vld [vmem:[%s237 + $0x8] sm:$0xff]
      %s578 = scalar_lea.vmem %s1, 4
      %v579 = vld [vmem:[%s578] sm:$0x3]
      %v582 = vcombine.high %v576, %v576
      %v583 = vcombine.high %v577, %v577
      %584 = vrot.lane.b32.xlu0 %v576, 126
      %v585 = vpop.permute.xlu0 %584
      %586 = vrot.lane.b32.xlu0 %v582, 126
      %v587 = vpop.permute.xlu0 %586
      %588 = vrot.lane.b32.xlu0 %v577, 126
      %v589 = vpop.permute.xlu0 %588
      %590 = vrot.lane.b32.xlu0 %v583, 126
      %v591 = vpop.permute.xlu0 %590
      %vm592 = vcmask 1031168
      %v593 = vsel %vm592, %v585, %v587
      %v594 = vsel %vm592, %v587, %v589
      %v595 = vsel %vm592, %v589, %v591
      %v597 = vsel %vm271, %v579, 0
      %v599 = vsel %vm275, %v593, 0
      %v601 = vsel %vm275, %v594, 0
      %v603 = vsel %vm275, %v595, 0
      %605 = vmatprep.subr.mxu0 %v601
      %606 = vmatpush1.msra.mxu0 %v599
      %607 = vmatprep.subr.mxu0 0.0
      %608 = vmatpush1.msra.mxu0 0.0
      %609 = vmatprep.subr.mxu0 0.0
      %610 = vmatpush1.msra.mxu0 0.0
      %611 = vmatprep.subr.mxu0 0.0
      %612 = vmatpush1.msra.mxu0 0.0
      %613 = vmatprep.subr.mxu0 0.0
      %614 = vmatpush1.msra.mxu0 0.0
      %615 = vmatprep.subr.mxu0 0.0
      %616 = vmatpush1.msra.mxu0 0.0
      %617 = vmatprep.subr.mxu0 0.0
      %618 = vmatpush1.msra.mxu0 0.0
      %619 = vmatprep.subr.mxu0 0.0
      %620 = vmatpush1.msra.mxu0 0.0
      %621 = vmatprep.subr.mxu0 0.0
      %622 = vmatpush1.msra.mxu0 0.0
      %623 = vmatprep.subr.mxu0 0.0
      %624 = vmatpush1.msra.mxu0 0.0
      %625 = vmatprep.subr.mxu0 0.0
      %626 = vmatpush1.msra.mxu0 0.0
      %627 = vmatprep.subr.mxu0 0.0
      %628 = vmatpush1.msra.mxu0 0.0
      %629 = vmatprep.subr.mxu0 0.0
      %630 = vmatpush1.msra.mxu0 0.0
      %631 = vmatprep.subr.mxu0 0.0
      %632 = vmatpush1.msra.mxu0 0.0
      %633 = vmatprep.subr.mxu0 0.0
      %634 = vmatpush1.msra.mxu0 0.0
      %635 = vmatprep.subr.mxu0 0.0
      %636 = vmatpush1.msra.mxu0 0.0
      %637 = vmatprep.subr.mxu0 0.0
      %638 = vmatpush1.msra.mxu0 0.0
      %639 = vmatprep.subr.mxu0 0.0
      %640 = vmatpush1.msra.mxu0 0.0
      %641 = vmatprep.subr.mxu0 0.0
      %642 = vmatpush1.msra.mxu0 0.0
      %643 = vmatprep.subr.mxu0 0.0
      %644 = vmatpush1.msra.mxu0 0.0
      %645 = vmatprep.subr.mxu0 0.0
      %646 = vmatpush1.msra.mxu0 0.0
      %647 = vmatprep.subr.mxu0 0.0
      %648 = vmatpush1.msra.mxu0 0.0
      %649 = vmatprep.subr.mxu0 0.0
      %650 = vmatpush1.msra.mxu0 0.0
      %651 = vmatprep.subr.mxu0 0.0
      %652 = vmatpush1.msra.mxu0 0.0
      %653 = vmatprep.subr.mxu0 0.0
      %654 = vmatpush1.msra.mxu0 0.0
      %655 = vmatprep.subr.mxu0 0.0
      %656 = vmatpush1.msra.mxu0 0.0
      %657 = vmatprep.subr.mxu0 0.0
      %658 = vmatpush1.msra.mxu0 0.0
      %659 = vmatprep.subr.mxu0 0.0
      %660 = vmatpush1.msra.mxu0 0.0
      %661 = vmatprep.subr.mxu0 0.0
      %662 = vmatpush1.msra.mxu0 0.0
      %663 = vmatprep.subr.mxu0 0.0
      %664 = vmatpush1.msra.mxu0 0.0
      %665 = vmatprep.subr.mxu0 0.0
      %666 = vmatpush1.msra.mxu0 0.0
      %667 = vmatprep.subr.mxu0 0.0
      %668 = vmatpush1.msra.mxu0 0.0
      %669 = vmatprep.mubr.f32.mxu0 0.0
      %670 = vmatmul.mubr.f32.gmra.mrb[0].mxu0 %v597
      %v671 = vpop.f32.mrb[0].mxu0
      %v672 = vadd.f32 0.0, %v671
      %v673 = vpop.f32.mrb[0].mxu0
      %v674 = vadd.f32 0.0, %v673
      %675 = vdwg.mxu0
      %676 = vmatprep.subr.mxu0 0.0
      %677 = vmatpush1.msra.mxu0 %v603
      %678 = vmatprep.subr.mxu0 0.0
      %679 = vmatpush1.msra.mxu0 0.0
      %680 = vmatprep.subr.mxu0 0.0
      %681 = vmatpush1.msra.mxu0 0.0
      %682 = vmatprep.subr.mxu0 0.0
      %683 = vmatpush1.msra.mxu0 0.0
      %684 = vmatprep.subr.mxu0 0.0
      %685 = vmatpush1.msra.mxu0 0.0
      %686 = vmatprep.subr.mxu0 0.0
      %687 = vmatpush1.msra.mxu0 0.0
      %688 = vmatprep.subr.mxu0 0.0
      %689 = vmatpush1.msra.mxu0 0.0
      %690 = vmatprep.subr.mxu0 0.0
      %691 = vmatpush1.msra.mxu0 0.0
      %692 = vmatprep.subr.mxu0 0.0
      %693 = vmatpush1.msra.mxu0 0.0
      %694 = vmatprep.subr.mxu0 0.0
      %695 = vmatpush1.msra.mxu0 0.0
      %696 = vmatprep.subr.mxu0 0.0
      %697 = vmatpush1.msra.mxu0 0.0
      %698 = vmatprep.subr.mxu0 0.0
      %699 = vmatpush1.msra.mxu0 0.0
      %700 = vmatprep.subr.mxu0 0.0
      %701 = vmatpush1.msra.mxu0 0.0
      %702 = vmatprep.subr.mxu0 0.0
      %703 = vmatpush1.msra.mxu0 0.0
      %704 = vmatprep.subr.mxu0 0.0
      %705 = vmatpush1.msra.mxu0 0.0
      %706 = vmatprep.subr.mxu0 0.0
      %707 = vmatpush1.msra.mxu0 0.0
      %708 = vmatprep.subr.mxu0 0.0
      %709 = vmatpush1.msra.mxu0 0.0
      %710 = vmatprep.subr.mxu0 0.0
      %711 = vmatpush1.msra.mxu0 0.0
      %712 = vmatprep.subr.mxu0 0.0
      %713 = vmatpush1.msra.mxu0 0.0
      %714 = vmatprep.subr.mxu0 0.0
      %715 = vmatpush1.msra.mxu0 0.0
      %716 = vmatprep.subr.mxu0 0.0
      %717 = vmatpush1.msra.mxu0 0.0
      %718 = vmatprep.subr.mxu0 0.0
      %719 = vmatpush1.msra.mxu0 0.0
      %720 = vmatprep.subr.mxu0 0.0
      %721 = vmatpush1.msra.mxu0 0.0
      %722 = vmatprep.subr.mxu0 0.0
      %723 = vmatpush1.msra.mxu0 0.0
      %724 = vmatprep.subr.mxu0 0.0
      %725 = vmatpush1.msra.mxu0 0.0
      %726 = vmatprep.subr.mxu0 0.0
      %727 = vmatpush1.msra.mxu0 0.0
      %728 = vmatprep.subr.mxu0 0.0
      %729 = vmatpush1.msra.mxu0 0.0
      %730 = vmatprep.subr.mxu0 0.0
      %731 = vmatpush1.msra.mxu0 0.0
      %732 = vmatprep.subr.mxu0 0.0
      %733 = vmatpush1.msra.mxu0 0.0
      %734 = vmatprep.subr.mxu0 0.0
      %735 = vmatpush1.msra.mxu0 0.0
      %736 = vmatprep.subr.mxu0 0.0
      %737 = vmatpush1.msra.mxu0 0.0
      %738 = vmatprep.subr.mxu0 0.0
      %739 = vmatpush1.msra.mxu0 0.0
      %740 = vmatprep.mubr.f32.mxu0 0.0
      %741 = vmatmul.mubr.f32.gmra.mrb[0].mxu0 %v597
      %v742 = vpop.f32.mrb[0].mxu0
      %v743 = vadd.f32 0.0, %v742
      %v744 = vpop.f32.mrb[0].mxu0
      %745 = vdwg.mxu0
      %v746 = vadd.f32 %v502, %v672
      %v747 = vadd.f32 %v504, %v674
      %v748 = vadd.f32 %v573, %v743
      %v749 = vld [vmem:[%s237] sm:$0xff]
      %v750 = vld [vmem:[%s237 + $0x8] sm:$0xff]
      %s751 = scalar_lea.vmem %s1, 6
      %v752 = vld [vmem:[%s751] sm:$0x3]
      %v755 = vcombine.high %v749, %v749
      %v756 = vcombine.high %v750, %v750
      %757 = vrot.lane.b32.xlu0 %v749, 110
      %v758 = vpop.permute.xlu0 %757
      %759 = vrot.lane.b32.xlu0 %v755, 110
      %v760 = vpop.permute.xlu0 %759
      %761 = vrot.lane.b32.xlu0 %v750, 110
      %v762 = vpop.permute.xlu0 %761
      %763 = vrot.lane.b32.xlu0 %v756, 110
      %v764 = vpop.permute.xlu0 %763
      %vm765 = vcmask 900096
      %v766 = vsel %vm765, %v758, %v760
      %v767 = vsel %vm765, %v760, %v762
      %v768 = vsel %vm765, %v762, %v764
      %v770 = vsel %vm271, %v752, 0
      %v772 = vsel %vm275, %v766, 0
      %v774 = vsel %vm275, %v767, 0
      %v776 = vsel %vm275, %v768, 0
      %778 = vmatprep.subr.mxu0 %v774
      %779 = vmatpush1.msra.mxu0 %v772
      %780 = vmatprep.subr.mxu0 0.0
      %781 = vmatpush1.msra.mxu0 0.0
      %782 = vmatprep.subr.mxu0 0.0
      %783 = vmatpush1.msra.mxu0 0.0
      %784 = vmatprep.subr.mxu0 0.0
      %785 = vmatpush1.msra.mxu0 0.0
      %786 = vmatprep.subr.mxu0 0.0
      %787 = vmatpush1.msra.mxu0 0.0
      %788 = vmatprep.subr.mxu0 0.0
      %789 = vmatpush1.msra.mxu0 0.0
      %790 = vmatprep.subr.mxu0 0.0
      %791 = vmatpush1.msra.mxu0 0.0
      %792 = vmatprep.subr.mxu0 0.0
      %793 = vmatpush1.msra.mxu0 0.0
      %794 = vmatprep.subr.mxu0 0.0
      %795 = vmatpush1.msra.mxu0 0.0
      %796 = vmatprep.subr.mxu0 0.0
      %797 = vmatpush1.msra.mxu0 0.0
      %798 = vmatprep.subr.mxu0 0.0
      %799 = vmatpush1.msra.mxu0 0.0
      %800 = vmatprep.subr.mxu0 0.0
      %801 = vmatpush1.msra.mxu0 0.0
      %802 = vmatprep.subr.mxu0 0.0
      %803 = vmatpush1.msra.mxu0 0.0
      %804 = vmatprep.subr.mxu0 0.0
      %805 = vmatpush1.msra.mxu0 0.0
      %806 = vmatprep.subr.mxu0 0.0
      %807 = vmatpush1.msra.mxu0 0.0
      %808 = vmatprep.subr.mxu0 0.0
      %809 = vmatpush1.msra.mxu0 0.0
      %810 = vmatprep.subr.mxu0 0.0
      %811 = vmatpush1.msra.mxu0 0.0
      %812 = vmatprep.subr.mxu0 0.0
      %813 = vmatpush1.msra.mxu0 0.0
      %814 = vmatprep.subr.mxu0 0.0
      %815 = vmatpush1.msra.mxu0 0.0
      %816 = vmatprep.subr.mxu0 0.0
      %817 = vmatpush1.msra.mxu0 0.0
      %818 = vmatprep.subr.mxu0 0.0
      %819 = vmatpush1.msra.mxu0 0.0
      %820 = vmatprep.subr.mxu0 0.0
      %821 = vmatpush1.msra.mxu0 0.0
      %822 = vmatprep.subr.mxu0 0.0
      %823 = vmatpush1.msra.mxu0 0.0
      %824 = vmatprep.subr.mxu0 0.0
      %825 = vmatpush1.msra.mxu0 0.0
      %826 = vmatprep.subr.mxu0 0.0
      %827 = vmatpush1.msra.mxu0 0.0
      %828 = vmatprep.subr.mxu0 0.0
      %829 = vmatpush1.msra.mxu0 0.0
      %830 = vmatprep.subr.mxu0 0.0
      %831 = vmatpush1.msra.mxu0 0.0
      %832 = vmatprep.subr.mxu0 0.0
      %833 = vmatpush1.msra.mxu0 0.0
      %834 = vmatprep.subr.mxu0 0.0
      %835 = vmatpush1.msra.mxu0 0.0
      %836 = vmatprep.subr.mxu0 0.0
      %837 = vmatpush1.msra.mxu0 0.0
      %838 = vmatprep.subr.mxu0 0.0
      %839 = vmatpush1.msra.mxu0 0.0
      %840 = vmatprep.subr.mxu0 0.0
      %841 = vmatpush1.msra.mxu0 0.0
      %842 = vmatprep.mubr.f32.mxu0 0.0
      %843 = vmatmul.mubr.f32.gmra.mrb[0].mxu0 %v770
      %v844 = vpop.f32.mrb[0].mxu0
      %v845 = vadd.f32 0.0, %v844
      %v846 = vpop.f32.mrb[0].mxu0
      %v847 = vadd.f32 0.0, %v846
      %848 = vdwg.mxu0
      %849 = vmatprep.subr.mxu0 0.0
      %850 = vmatpush1.msra.mxu0 %v776
      %851 = vmatprep.subr.mxu0 0.0
      %852 = vmatpush1.msra.mxu0 0.0
      %853 = vmatprep.subr.mxu0 0.0
      %854 = vmatpush1.msra.mxu0 0.0
      %855 = vmatprep.subr.mxu0 0.0
      %856 = vmatpush1.msra.mxu0 0.0
      %857 = vmatprep.subr.mxu0 0.0
      %858 = vmatpush1.msra.mxu0 0.0
      %859 = vmatprep.subr.mxu0 0.0
      %860 = vmatpush1.msra.mxu0 0.0
      %861 = vmatprep.subr.mxu0 0.0
      %862 = vmatpush1.msra.mxu0 0.0
      %863 = vmatprep.subr.mxu0 0.0
      %864 = vmatpush1.msra.mxu0 0.0
      %865 = vmatprep.subr.mxu0 0.0
      %866 = vmatpush1.msra.mxu0 0.0
      %867 = vmatprep.subr.mxu0 0.0
      %868 = vmatpush1.msra.mxu0 0.0
      %869 = vmatprep.subr.mxu0 0.0
      %870 = vmatpush1.msra.mxu0 0.0
      %871 = vmatprep.subr.mxu0 0.0
      %872 = vmatpush1.msra.mxu0 0.0
      %873 = vmatprep.subr.mxu0 0.0
      %874 = vmatpush1.msra.mxu0 0.0
      %875 = vmatprep.subr.mxu0 0.0
      %876 = vmatpush1.msra.mxu0 0.0
      %877 = vmatprep.subr.mxu0 0.0
      %878 = vmatpush1.msra.mxu0 0.0
      %879 = vmatprep.subr.mxu0 0.0
      %880 = vmatpush1.msra.mxu0 0.0
      %881 = vmatprep.subr.mxu0 0.0
      %882 = vmatpush1.msra.mxu0 0.0
      %883 = vmatprep.subr.mxu0 0.0
      %884 = vmatpush1.msra.mxu0 0.0
      %885 = vmatprep.subr.mxu0 0.0
      %886 = vmatpush1.msra.mxu0 0.0
      %887 = vmatprep.subr.mxu0 0.0
      %888 = vmatpush1.msra.mxu0 0.0
      %889 = vmatprep.subr.mxu0 0.0
      %890 = vmatpush1.msra.mxu0 0.0
      %891 = vmatprep.subr.mxu0 0.0
      %892 = vmatpush1.msra.mxu0 0.0
      %893 = vmatprep.subr.mxu0 0.0
      %894 = vmatpush1.msra.mxu0 0.0
      %895 = vmatprep.subr.mxu0 0.0
      %896 = vmatpush1.msra.mxu0 0.0
      %897 = vmatprep.subr.mxu0 0.0
      %898 = vmatpush1.msra.mxu0 0.0
      %899 = vmatprep.subr.mxu0 0.0
      %900 = vmatpush1.msra.mxu0 0.0
      %901 = vmatprep.subr.mxu0 0.0
      %902 = vmatpush1.msra.mxu0 0.0
      %903 = vmatprep.subr.mxu0 0.0
      %904 = vmatpush1.msra.mxu0 0.0
      %905 = vmatprep.subr.mxu0 0.0
      %906 = vmatpush1.msra.mxu0 0.0
      %907 = vmatprep.subr.mxu0 0.0
      %908 = vmatpush1.msra.mxu0 0.0
      %909 = vmatprep.subr.mxu0 0.0
      %910 = vmatpush1.msra.mxu0 0.0
      %911 = vmatprep.subr.mxu0 0.0
      %912 = vmatpush1.msra.mxu0 0.0
      %913 = vmatprep.mubr.f32.mxu0 0.0
      %914 = vmatmul.mubr.f32.gmra.mrb[0].mxu0 %v770
      %v915 = vpop.f32.mrb[0].mxu0
      %v916 = vadd.f32 0.0, %v915
      %v917 = vpop.f32.mrb[0].mxu0
      %918 = vdwg.mxu0
      %v919 = vadd.f32 %v746, %v845
      %v920 = vadd.f32 %v747, %v847
      %v921 = vadd.f32 %v748, %v916
      %v922 = vld [vmem:[%s237] sm:$0xff]
      %v923 = vld [vmem:[%s237 + $0x8] sm:$0xff]
      %s924 = scalar_lea.vmem %s1, 8
      %v925 = vld [vmem:[%s924] sm:$0x3]
      %v928 = vcombine.high %v922, %v922
      %v929 = vcombine.high %v923, %v923
      %930 = vrot.lane.b32.xlu0 %v922, 109
      %v931 = vpop.permute.xlu0 %930
      %932 = vrot.lane.b32.xlu0 %v928, 109
      %v933 = vpop.permute.xlu0 %932
      %934 = vrot.lane.b32.xlu0 %v923, 109
      %v935 = vpop.permute.xlu0 %934
      %936 = vrot.lane.b32.xlu0 %v929, 109
      %v937 = vpop.permute.xlu0 %936
      %vm938 = vcmask 891904
      %v939 = vsel %vm938, %v931, %v933
      %v940 = vsel %vm938, %v933, %v935
      %v941 = vsel %vm938, %v935, %v937
      %v943 = vsel %vm271, %v925, 0
      %v945 = vsel %vm275, %v939, 0
      %v947 = vsel %vm275, %v940, 0
      %v949 = vsel %vm275, %v941, 0
      %951 = vmatprep.subr.mxu0 %v947
      %952 = vmatpush1.msra.mxu0 %v945
      %953 = vmatprep.subr.mxu0 0.0
      %954 = vmatpush1.msra.mxu0 0.0
      %955 = vmatprep.subr.mxu0 0.0
      %956 = vmatpush1.msra.mxu0 0.0
      %957 = vmatprep.subr.mxu0 0.0
      %958 = vmatpush1.msra.mxu0 0.0
      %959 = vmatprep.subr.mxu0 0.0
      %960 = vmatpush1.msra.mxu0 0.0
      %961 = vmatprep.subr.mxu0 0.0
      %962 = vmatpush1.msra.mxu0 0.0
      %963 = vmatprep.subr.mxu0 0.0
      %964 = vmatpush1.msra.mxu0 0.0
      %965 = vmatprep.subr.mxu0 0.0
      %966 = vmatpush1.msra.mxu0 0.0
      %967 = vmatprep.subr.mxu0 0.0
      %968 = vmatpush1.msra.mxu0 0.0
      %969 = vmatprep.subr.mxu0 0.0
      %970 = vmatpush1.msra.mxu0 0.0
      %971 = vmatprep.subr.mxu0 0.0
      %972 = vmatpush1.msra.mxu0 0.0
      %973 = vmatprep.subr.mxu0 0.0
      %974 = vmatpush1.msra.mxu0 0.0
      %975 = vmatprep.subr.mxu0 0.0
      %976 = vmatpush1.msra.mxu0 0.0
      %977 = vmatprep.subr.mxu0 0.0
      %978 = vmatpush1.msra.mxu0 0.0
      %979 = vmatprep.subr.mxu0 0.0
      %980 = vmatpush1.msra.mxu0 0.0
      %981 = vmatprep.subr.mxu0 0.0
      %982 = vmatpush1.msra.mxu0 0.0
      %983 = vmatprep.subr.mxu0 0.0
      %984 = vmatpush1.msra.mxu0 0.0
      %985 = vmatprep.subr.mxu0 0.0
      %986 = vmatpush1.msra.mxu0 0.0
      %987 = vmatprep.subr.mxu0 0.0
      %988 = vmatpush1.msra.mxu0 0.0
      %989 = vmatprep.subr.mxu0 0.0
      %990 = vmatpush1.msra.mxu0 0.0
      %991 = vmatprep.subr.mxu0 0.0
      %992 = vmatpush1.msra.mxu0 0.0
      %993 = vmatprep.subr.mxu0 0.0
      %994 = vmatpush1.msra.mxu0 0.0
      %995 = vmatprep.subr.mxu0 0.0
      %996 = vmatpush1.msra.mxu0 0.0
      %997 = vmatprep.subr.mxu0 0.0
      %998 = vmatpush1.msra.mxu0 0.0
      %999 = vmatprep.subr.mxu0 0.0
      %1000 = vmatpush1.msra.mxu0 0.0
      %1001 = vmatprep.subr.mxu0 0.0
      %1002 = vmatpush1.msra.mxu0 0.0
      %1003 = vmatprep.subr.mxu0 0.0
      %1004 = vmatpush1.msra.mxu0 0.0
      %1005 = vmatprep.subr.mxu0 0.0
      %1006 = vmatpush1.msra.mxu0 0.0
      %1007 = vmatprep.subr.mxu0 0.0
      %1008 = vmatpush1.msra.mxu0 0.0
      %1009 = vmatprep.subr.mxu0 0.0
      %1010 = vmatpush1.msra.mxu0 0.0
      %1011 = vmatprep.subr.mxu0 0.0
      %1012 = vmatpush1.msra.mxu0 0.0
      %1013 = vmatprep.subr.mxu0 0.0
      %1014 = vmatpush1.msra.mxu0 0.0
      %1015 = vmatprep.mubr.f32.mxu0 0.0
      %1016 = vmatmul.mubr.f32.gmra.mrb[0].mxu0 %v943
      %v1017 = vpop.f32.mrb[0].mxu0
      %v1018 = vadd.f32 0.0, %v1017
      %v1019 = vpop.f32.mrb[0].mxu0
      %v1020 = vadd.f32 0.0, %v1019
      %1021 = vdwg.mxu0
      %1022 = vmatprep.subr.mxu0 0.0
      %1023 = vmatpush1.msra.mxu0 %v949
      %1024 = vmatprep.subr.mxu0 0.0
      %1025 = vmatpush1.msra.mxu0 0.0
      %1026 = vmatprep.subr.mxu0 0.0
      %1027 = vmatpush1.msra.mxu0 0.0
      %1028 = vmatprep.subr.mxu0 0.0
      %1029 = vmatpush1.msra.mxu0 0.0
      %1030 = vmatprep.subr.mxu0 0.0
      %1031 = vmatpush1.msra.mxu0 0.0
      %1032 = vmatprep.subr.mxu0 0.0
      %1033 = vmatpush1.msra.mxu0 0.0
      %1034 = vmatprep.subr.mxu0 0.0
      %1035 = vmatpush1.msra.mxu0 0.0
      %1036 = vmatprep.subr.mxu0 0.0
      %1037 = vmatpush1.msra.mxu0 0.0
      %1038 = vmatprep.subr.mxu0 0.0
      %1039 = vmatpush1.msra.mxu0 0.0
      %1040 = vmatprep.subr.mxu0 0.0
      %1041 = vmatpush1.msra.mxu0 0.0
      %1042 = vmatprep.subr.mxu0 0.0
      %1043 = vmatpush1.msra.mxu0 0.0
      %1044 = vmatprep.subr.mxu0 0.0
      %1045 = vmatpush1.msra.mxu0 0.0
      %1046 = vmatprep.subr.mxu0 0.0
      %1047 = vmatpush1.msra.mxu0 0.0
      %1048 = vmatprep.subr.mxu0 0.0
      %1049 = vmatpush1.msra.mxu0 0.0
      %1050 = vmatprep.subr.mxu0 0.0
      %1051 = vmatpush1.msra.mxu0 0.0
      %1052 = vmatprep.subr.mxu0 0.0
      %1053 = vmatpush1.msra.mxu0 0.0
      %1054 = vmatprep.subr.mxu0 0.0
      %1055 = vmatpush1.msra.mxu0 0.0
      %1056 = vmatprep.subr.mxu0 0.0
      %1057 = vmatpush1.msra.mxu0 0.0
      %1058 = vmatprep.subr.mxu0 0.0
      %1059 = vmatpush1.msra.mxu0 0.0
      %1060 = vmatprep.subr.mxu0 0.0
      %1061 = vmatpush1.msra.mxu0 0.0
      %1062 = vmatprep.subr.mxu0 0.0
      %1063 = vmatpush1.msra.mxu0 0.0
      %1064 = vmatprep.subr.mxu0 0.0
      %1065 = vmatpush1.msra.mxu0 0.0
      %1066 = vmatprep.subr.mxu0 0.0
      %1067 = vmatpush1.msra.mxu0 0.0
      %1068 = vmatprep.subr.mxu0 0.0
      %1069 = vmatpush1.msra.mxu0 0.0
      %1070 = vmatprep.subr.mxu0 0.0
      %1071 = vmatpush1.msra.mxu0 0.0
      %1072 = vmatprep.subr.mxu0 0.0
      %1073 = vmatpush1.msra.mxu0 0.0
      %1074 = vmatprep.subr.mxu0 0.0
      %1075 = vmatpush1.msra.mxu0 0.0
      %1076 = vmatprep.subr.mxu0 0.0
      %1077 = vmatpush1.msra.mxu0 0.0
      %1078 = vmatprep.subr.mxu0 0.0
      %1079 = vmatpush1.msra.mxu0 0.0
      %1080 = vmatprep.subr.mxu0 0.0
      %1081 = vmatpush1.msra.mxu0 0.0
      %1082 = vmatprep.subr.mxu0 0.0
      %1083 = vmatpush1.msra.mxu0 0.0
      %1084 = vmatprep.subr.mxu0 0.0
      %1085 = vmatpush1.msra.mxu0 0.0
      %1086 = vmatprep.mubr.f32.mxu0 0.0
      %1087 = vmatmul.mubr.f32.gmra.mrb[0].mxu0 %v943
      %v1088 = vpop.f32.mrb[0].mxu0
      %v1089 = vadd.f32 0.0, %v1088
      %v1090 = vpop.f32.mrb[0].mxu0
      %1091 = vdwg.mxu0
      %v1092 = vadd.f32 %v919, %v1018
      %v1093 = vadd.f32 %v920, %v1020
      %v1094 = vadd.f32 %v921, %v1089
      %v1095 = vld [vmem:[%s237] sm:$0xff]
      %v1096 = vld [vmem:[%s237 + $0x8] sm:$0xff]
      %s1097 = scalar_lea.vmem %s1, 10
      %v1098 = vld [vmem:[%s1097] sm:$0x3]
      %v1101 = vcombine.high %v1095, %v1095
      %v1102 = vcombine.high %v1096, %v1096
      %1103 = vrot.lane.b32.xlu0 %v1095, 108
      %v1104 = vpop.permute.xlu0 %1103
      %1105 = vrot.lane.b32.xlu0 %v1101, 108
      %v1106 = vpop.permute.xlu0 %1105
      %1107 = vrot.lane.b32.xlu0 %v1096, 108
      %v1108 = vpop.permute.xlu0 %1107
      %1109 = vrot.lane.b32.xlu0 %v1102, 108
      %v1110 = vpop.permute.xlu0 %1109
      %vm1111 = vcmask 883712
      %v1112 = vsel %vm1111, %v1104, %v1106
      %v1113 = vsel %vm1111, %v1106, %v1108
      %v1114 = vsel %vm1111, %v1108, %v1110
      %v1116 = vsel %vm271, %v1098, 0
      %v1118 = vsel %vm275, %v1112, 0
      %v1120 = vsel %vm275, %v1113, 0
      %v1122 = vsel %vm275, %v1114, 0
      %1124 = vmatprep.subr.mxu0 %v1120
      %1125 = vmatpush1.msra.mxu0 %v1118
      %1126 = vmatprep.subr.mxu0 0.0
      %1127 = vmatpush1.msra.mxu0 0.0
      %1128 = vmatprep.subr.mxu0 0.0
      %1129 = vmatpush1.msra.mxu0 0.0
      %1130 = vmatprep.subr.mxu0 0.0
      %1131 = vmatpush1.msra.mxu0 0.0
      %1132 = vmatprep.subr.mxu0 0.0
      %1133 = vmatpush1.msra.mxu0 0.0
      %1134 = vmatprep.subr.mxu0 0.0
      %1135 = vmatpush1.msra.mxu0 0.0
      %1136 = vmatprep.subr.mxu0 0.0
      %1137 = vmatpush1.msra.mxu0 0.0
      %1138 = vmatprep.subr.mxu0 0.0
      %1139 = vmatpush1.msra.mxu0 0.0
      %1140 = vmatprep.subr.mxu0 0.0
      %1141 = vmatpush1.msra.mxu0 0.0
      %1142 = vmatprep.subr.mxu0 0.0
      %1143 = vmatpush1.msra.mxu0 0.0
      %1144 = vmatprep.subr.mxu0 0.0
      %1145 = vmatpush1.msra.mxu0 0.0
      %1146 = vmatprep.subr.mxu0 0.0
      %1147 = vmatpush1.msra.mxu0 0.0
      %1148 = vmatprep.subr.mxu0 0.0
      %1149 = vmatpush1.msra.mxu0 0.0
      %1150 = vmatprep.subr.mxu0 0.0
      %1151 = vmatpush1.msra.mxu0 0.0
      %1152 = vmatprep.subr.mxu0 0.0
      %1153 = vmatpush1.msra.mxu0 0.0
      %1154 = vmatprep.subr.mxu0 0.0
      %1155 = vmatpush1.msra.mxu0 0.0
      %1156 = vmatprep.subr.mxu0 0.0
      %1157 = vmatpush1.msra.mxu0 0.0
      %1158 = vmatprep.subr.mxu0 0.0
      %1159 = vmatpush1.msra.mxu0 0.0
      %1160 = vmatprep.subr.mxu0 0.0
      %1161 = vmatpush1.msra.mxu0 0.0
      %1162 = vmatprep.subr.mxu0 0.0
      %1163 = vmatpush1.msra.mxu0 0.0
      %1164 = vmatprep.subr.mxu0 0.0
      %1165 = vmatpush1.msra.mxu0 0.0
      %1166 = vmatprep.subr.mxu0 0.0
      %1167 = vmatpush1.msra.mxu0 0.0
      %1168 = vmatprep.subr.mxu0 0.0
      %1169 = vmatpush1.msra.mxu0 0.0
      %1170 = vmatprep.subr.mxu0 0.0
      %1171 = vmatpush1.msra.mxu0 0.0
      %1172 = vmatprep.subr.mxu0 0.0
      %1173 = vmatpush1.msra.mxu0 0.0
      %1174 = vmatprep.subr.mxu0 0.0
      %1175 = vmatpush1.msra.mxu0 0.0
      %1176 = vmatprep.subr.mxu0 0.0
      %1177 = vmatpush1.msra.mxu0 0.0
      %1178 = vmatprep.subr.mxu0 0.0
      %1179 = vmatpush1.msra.mxu0 0.0
      %1180 = vmatprep.subr.mxu0 0.0
      %1181 = vmatpush1.msra.mxu0 0.0
      %1182 = vmatprep.subr.mxu0 0.0
      %1183 = vmatpush1.msra.mxu0 0.0
      %1184 = vmatprep.subr.mxu0 0.0
      %1185 = vmatpush1.msra.mxu0 0.0
      %1186 = vmatprep.subr.mxu0 0.0
      %1187 = vmatpush1.msra.mxu0 0.0
      %1188 = vmatprep.mubr.f32.mxu0 0.0
      %1189 = vmatmul.mubr.f32.gmra.mrb[0].mxu0 %v1116
      %v1190 = vpop.f32.mrb[0].mxu0
      %v1191 = vadd.f32 0.0, %v1190
      %v1192 = vpop.f32.mrb[0].mxu0
      %v1193 = vadd.f32 0.0, %v1192
      %1194 = vdwg.mxu0
      %1195 = vmatprep.subr.mxu0 0.0
      %1196 = vmatpush1.msra.mxu0 %v1122
      %1197 = vmatprep.subr.mxu0 0.0
      %1198 = vmatpush1.msra.mxu0 0.0
      %1199 = vmatprep.subr.mxu0 0.0
      %1200 = vmatpush1.msra.mxu0 0.0
      %1201 = vmatprep.subr.mxu0 0.0
      %1202 = vmatpush1.msra.mxu0 0.0
      %1203 = vmatprep.subr.mxu0 0.0
      %1204 = vmatpush1.msra.mxu0 0.0
      %1205 = vmatprep.subr.mxu0 0.0
      %1206 = vmatpush1.msra.mxu0 0.0
      %1207 = vmatprep.subr.mxu0 0.0
      %1208 = vmatpush1.msra.mxu0 0.0
      %1209 = vmatprep.subr.mxu0 0.0
      %1210 = vmatpush1.msra.mxu0 0.0
      %1211 = vmatprep.subr.mxu0 0.0
      %1212 = vmatpush1.msra.mxu0 0.0
      %1213 = vmatprep.subr.mxu0 0.0
      %1214 = vmatpush1.msra.mxu0 0.0
      %1215 = vmatprep.subr.mxu0 0.0
      %1216 = vmatpush1.msra.mxu0 0.0
      %1217 = vmatprep.subr.mxu0 0.0
      %1218 = vmatpush1.msra.mxu0 0.0
      %1219 = vmatprep.subr.mxu0 0.0
      %1220 = vmatpush1.msra.mxu0 0.0
      %1221 = vmatprep.subr.mxu0 0.0
      %1222 = vmatpush1.msra.mxu0 0.0
      %1223 = vmatprep.subr.mxu0 0.0
      %1224 = vmatpush1.msra.mxu0 0.0
      %1225 = vmatprep.subr.mxu0 0.0
      %1226 = vmatpush1.msra.mxu0 0.0
      %1227 = vmatprep.subr.mxu0 0.0
      %1228 = vmatpush1.msra.mxu0 0.0
      %1229 = vmatprep.subr.mxu0 0.0
      %1230 = vmatpush1.msra.mxu0 0.0
      %1231 = vmatprep.subr.mxu0 0.0
      %1232 = vmatpush1.msra.mxu0 0.0
      %1233 = vmatprep.subr.mxu0 0.0
      %1234 = vmatpush1.msra.mxu0 0.0
      %1235 = vmatprep.subr.mxu0 0.0
      %1236 = vmatpush1.msra.mxu0 0.0
      %1237 = vmatprep.subr.mxu0 0.0
      %1238 = vmatpush1.msra.mxu0 0.0
      %1239 = vmatprep.subr.mxu0 0.0
      %1240 = vmatpush1.msra.mxu0 0.0
      %1241 = vmatprep.subr.mxu0 0.0
      %1242 = vmatpush1.msra.mxu0 0.0
      %1243 = vmatprep.subr.mxu0 0.0
      %1244 = vmatpush1.msra.mxu0 0.0
      %1245 = vmatprep.subr.mxu0 0.0
      %1246 = vmatpush1.msra.mxu0 0.0
      %1247 = vmatprep.subr.mxu0 0.0
      %1248 = vmatpush1.msra.mxu0 0.0
      %1249 = vmatprep.subr.mxu0 0.0
      %1250 = vmatpush1.msra.mxu0 0.0
      %1251 = vmatprep.subr.mxu0 0.0
      %1252 = vmatpush1.msra.mxu0 0.0
      %1253 = vmatprep.subr.mxu0 0.0
      %1254 = vmatpush1.msra.mxu0 0.0
      %1255 = vmatprep.subr.mxu0 0.0
      %1256 = vmatpush1.msra.mxu0 0.0
      %1257 = vmatprep.subr.mxu0 0.0
      %1258 = vmatpush1.msra.mxu0 0.0
      %1259 = vmatprep.mubr.f32.mxu0 0.0
      %1260 = vmatmul.mubr.f32.gmra.mrb[0].mxu0 %v1116
      %v1261 = vpop.f32.mrb[0].mxu0
      %v1262 = vadd.f32 0.0, %v1261
      %v1263 = vpop.f32.mrb[0].mxu0
      %1264 = vdwg.mxu0
      %v1265 = vadd.f32 %v1092, %v1191
      %v1266 = vadd.f32 %v1093, %v1193
      %v1267 = vadd.f32 %v1094, %v1262
      %v1268 = vld [vmem:[%s237] sm:$0xff]
      %v1269 = vld [vmem:[%s237 + $0x8] sm:$0xff]
      %s1270 = scalar_lea.vmem %s1, 12
      %v1271 = vld [vmem:[%s1270] sm:$0x3]
      %v1274 = vcombine.high %v1268, %v1268
      %v1275 = vcombine.high %v1269, %v1269
      %1276 = vrot.lane.b32.xlu0 %v1268, 92
      %v1277 = vpop.permute.xlu0 %1276
      %1278 = vrot.lane.b32.xlu0 %v1274, 92
      %v1279 = vpop.permute.xlu0 %1278
      %1280 = vrot.lane.b32.xlu0 %v1269, 92
      %v1281 = vpop.permute.xlu0 %1280
      %1282 = vrot.lane.b32.xlu0 %v1275, 92
      %v1283 = vpop.permute.xlu0 %1282
      %vm1284 = vcmask 752640
      %v1285 = vsel %vm1284, %v1277, %v1279
      %v1286 = vsel %vm1284, %v1279, %v1281
      %v1287 = vsel %vm1284, %v1281, %v1283
      %v1289 = vsel %vm271, %v1271, 0
      %v1291 = vsel %vm275, %v1285, 0
      %v1293 = vsel %vm275, %v1286, 0
      %v1295 = vsel %vm275, %v1287, 0
      %1297 = vmatprep.subr.mxu0 %v1293
      %1298 = vmatpush1.msra.mxu0 %v1291
      %1299 = vmatprep.subr.mxu0 0.0
      %1300 = vmatpush1.msra.mxu0 0.0
      %1301 = vmatprep.subr.mxu0 0.0
      %1302 = vmatpush1.msra.mxu0 0.0
      %1303 = vmatprep.subr.mxu0 0.0
      %1304 = vmatpush1.msra.mxu0 0.0
      %1305 = vmatprep.subr.mxu0 0.0
      %1306 = vmatpush1.msra.mxu0 0.0
      %1307 = vmatprep.subr.mxu0 0.0
      %1308 = vmatpush1.msra.mxu0 0.0
      %1309 = vmatprep.subr.mxu0 0.0
      %1310 = vmatpush1.msra.mxu0 0.0
      %1311 = vmatprep.subr.mxu0 0.0
      %1312 = vmatpush1.msra.mxu0 0.0
      %1313 = vmatprep.subr.mxu0 0.0
      %1314 = vmatpush1.msra.mxu0 0.0
      %1315 = vmatprep.subr.mxu0 0.0
      %1316 = vmatpush1.msra.mxu0 0.0
      %1317 = vmatprep.subr.mxu0 0.0
      %1318 = vmatpush1.msra.mxu0 0.0
      %1319 = vmatprep.subr.mxu0 0.0
      %1320 = vmatpush1.msra.mxu0 0.0
      %1321 = vmatprep.subr.mxu0 0.0
      %1322 = vmatpush1.msra.mxu0 0.0
      %1323 = vmatprep.subr.mxu0 0.0
      %1324 = vmatpush1.msra.mxu0 0.0
      %1325 = vmatprep.subr.mxu0 0.0
      %1326 = vmatpush1.msra.mxu0 0.0
      %1327 = vmatprep.subr.mxu0 0.0
      %1328 = vmatpush1.msra.mxu0 0.0
      %1329 = vmatprep.subr.mxu0 0.0
      %1330 = vmatpush1.msra.mxu0 0.0
      %1331 = vmatprep.subr.mxu0 0.0
      %1332 = vmatpush1.msra.mxu0 0.0
      %1333 = vmatprep.subr.mxu0 0.0
      %1334 = vmatpush1.msra.mxu0 0.0
      %1335 = vmatprep.subr.mxu0 0.0
      %1336 = vmatpush1.msra.mxu0 0.0
      %1337 = vmatprep.subr.mxu0 0.0
      %1338 = vmatpush1.msra.mxu0 0.0
      %1339 = vmatprep.subr.mxu0 0.0
      %1340 = vmatpush1.msra.mxu0 0.0
      %1341 = vmatprep.subr.mxu0 0.0
      %1342 = vmatpush1.msra.mxu0 0.0
      %1343 = vmatprep.subr.mxu0 0.0
      %1344 = vmatpush1.msra.mxu0 0.0
      %1345 = vmatprep.subr.mxu0 0.0
      %1346 = vmatpush1.msra.mxu0 0.0
      %1347 = vmatprep.subr.mxu0 0.0
      %1348 = vmatpush1.msra.mxu0 0.0
      %1349 = vmatprep.subr.mxu0 0.0
      %1350 = vmatpush1.msra.mxu0 0.0
      %1351 = vmatprep.subr.mxu0 0.0
      %1352 = vmatpush1.msra.mxu0 0.0
      %1353 = vmatprep.subr.mxu0 0.0
      %1354 = vmatpush1.msra.mxu0 0.0
      %1355 = vmatprep.subr.mxu0 0.0
      %1356 = vmatpush1.msra.mxu0 0.0
      %1357 = vmatprep.subr.mxu0 0.0
      %1358 = vmatpush1.msra.mxu0 0.0
      %1359 = vmatprep.subr.mxu0 0.0
      %1360 = vmatpush1.msra.mxu0 0.0
      %1361 = vmatprep.mubr.f32.mxu0 0.0
      %1362 = vmatmul.mubr.f32.gmra.mrb[0].mxu0 %v1289
      %v1363 = vpop.f32.mrb[0].mxu0
      %v1364 = vadd.f32 0.0, %v1363
      %v1365 = vpop.f32.mrb[0].mxu0
      %v1366 = vadd.f32 0.0, %v1365
      %1367 = vdwg.mxu0
      %1368 = vmatprep.subr.mxu0 0.0
      %1369 = vmatpush1.msra.mxu0 %v1295
      %1370 = vmatprep.subr.mxu0 0.0
      %1371 = vmatpush1.msra.mxu0 0.0
      %1372 = vmatprep.subr.mxu0 0.0
      %1373 = vmatpush1.msra.mxu0 0.0
      %1374 = vmatprep.subr.mxu0 0.0
      %1375 = vmatpush1.msra.mxu0 0.0
      %1376 = vmatprep.subr.mxu0 0.0
      %1377 = vmatpush1.msra.mxu0 0.0
      %1378 = vmatprep.subr.mxu0 0.0
      %1379 = vmatpush1.msra.mxu0 0.0
      %1380 = vmatprep.subr.mxu0 0.0
      %1381 = vmatpush1.msra.mxu0 0.0
      %1382 = vmatprep.subr.mxu0 0.0
      %1383 = vmatpush1.msra.mxu0 0.0
      %1384 = vmatprep.subr.mxu0 0.0
      %1385 = vmatpush1.msra.mxu0 0.0
      %1386 = vmatprep.subr.mxu0 0.0
      %1387 = vmatpush1.msra.mxu0 0.0
      %1388 = vmatprep.subr.mxu0 0.0
      %1389 = vmatpush1.msra.mxu0 0.0
      %1390 = vmatprep.subr.mxu0 0.0
      %1391 = vmatpush1.msra.mxu0 0.0
      %1392 = vmatprep.subr.mxu0 0.0
      %1393 = vmatpush1.msra.mxu0 0.0
      %1394 = vmatprep.subr.mxu0 0.0
      %1395 = vmatpush1.msra.mxu0 0.0
      %1396 = vmatprep.subr.mxu0 0.0
      %1397 = vmatpush1.msra.mxu0 0.0
      %1398 = vmatprep.subr.mxu0 0.0
      %1399 = vmatpush1.msra.mxu0 0.0
      %1400 = vmatprep.subr.mxu0 0.0
      %1401 = vmatpush1.msra.mxu0 0.0
      %1402 = vmatprep.subr.mxu0 0.0
      %1403 = vmatpush1.msra.mxu0 0.0
      %1404 = vmatprep.subr.mxu0 0.0
      %1405 = vmatpush1.msra.mxu0 0.0
      %1406 = vmatprep.subr.mxu0 0.0
      %1407 = vmatpush1.msra.mxu0 0.0
      %1408 = vmatprep.subr.mxu0 0.0
      %1409 = vmatpush1.msra.mxu0 0.0
      %1410 = vmatprep.subr.mxu0 0.0
      %1411 = vmatpush1.msra.mxu0 0.0
      %1412 = vmatprep.subr.mxu0 0.0
      %1413 = vmatpush1.msra.mxu0 0.0
      %1414 = vmatprep.subr.mxu0 0.0
      %1415 = vmatpush1.msra.mxu0 0.0
      %1416 = vmatprep.subr.mxu0 0.0
      %1417 = vmatpush1.msra.mxu0 0.0
      %1418 = vmatprep.subr.mxu0 0.0
      %1419 = vmatpush1.msra.mxu0 0.0
      %1420 = vmatprep.subr.mxu0 0.0
      %1421 = vmatpush1.msra.mxu0 0.0
      %1422 = vmatprep.subr.mxu0 0.0
      %1423 = vmatpush1.msra.mxu0 0.0
      %1424 = vmatprep.subr.mxu0 0.0
      %1425 = vmatpush1.msra.mxu0 0.0
      %1426 = vmatprep.subr.mxu0 0.0
      %1427 = vmatpush1.msra.mxu0 0.0
      %1428 = vmatprep.subr.mxu0 0.0
      %1429 = vmatpush1.msra.mxu0 0.0
      %1430 = vmatprep.subr.mxu0 0.0
      %1431 = vmatpush1.msra.mxu0 0.0
      %1432 = vmatprep.mubr.f32.mxu0 0.0
      %1433 = vmatmul.mubr.f32.gmra.mrb[0].mxu0 %v1289
      %v1434 = vpop.f32.mrb[0].mxu0
      %v1435 = vadd.f32 0.0, %v1434
      %v1436 = vpop.f32.mrb[0].mxu0
      %1437 = vdwg.mxu0
      %v1438 = vadd.f32 %v1265, %v1364
      %v1439 = vadd.f32 %v1266, %v1366
      %v1440 = vadd.f32 %v1267, %v1435
      %v1441 = vld [vmem:[%s237] sm:$0xff]
      %v1442 = vld [vmem:[%s237 + $0x8] sm:$0xff]
      %s1443 = scalar_lea.vmem %s1, 14
      %v1444 = vld [vmem:[%s1443] sm:$0x3]
      %v1447 = vcombine.high %v1441, %v1441
      %v1448 = vcombine.high %v1442, %v1442
      %1449 = vrot.lane.b32.xlu0 %v1441, 91
      %v1450 = vpop.permute.xlu0 %1449
      %1451 = vrot.lane.b32.xlu0 %v1447, 91
      %v1452 = vpop.permute.xlu0 %1451
      %1453 = vrot.lane.b32.xlu0 %v1442, 91
      %v1454 = vpop.permute.xlu0 %1453
      %1455 = vrot.lane.b32.xlu0 %v1448, 91
      %v1456 = vpop.permute.xlu0 %1455
      %vm1457 = vcmask 744448
      %v1458 = vsel %vm1457, %v1450, %v1452
      %v1459 = vsel %vm1457, %v1452, %v1454
      %v1460 = vsel %vm1457, %v1454, %v1456
      %v1462 = vsel %vm271, %v1444, 0
      %v1464 = vsel %vm275, %v1458, 0
      %v1466 = vsel %vm275, %v1459, 0
      %v1468 = vsel %vm275, %v1460, 0
      %1470 = vmatprep.subr.mxu0 %v1466
      %1471 = vmatpush1.msra.mxu0 %v1464
      %1472 = vmatprep.subr.mxu0 0.0
      %1473 = vmatpush1.msra.mxu0 0.0
      %1474 = vmatprep.subr.mxu0 0.0
      %1475 = vmatpush1.msra.mxu0 0.0
      %1476 = vmatprep.subr.mxu0 0.0
      %1477 = vmatpush1.msra.mxu0 0.0
      %1478 = vmatprep.subr.mxu0 0.0
      %1479 = vmatpush1.msra.mxu0 0.0
      %1480 = vmatprep.subr.mxu0 0.0
      %1481 = vmatpush1.msra.mxu0 0.0
      %1482 = vmatprep.subr.mxu0 0.0
      %1483 = vmatpush1.msra.mxu0 0.0
      %1484 = vmatprep.subr.mxu0 0.0
      %1485 = vmatpush1.msra.mxu0 0.0
      %1486 = vmatprep.subr.mxu0 0.0
      %1487 = vmatpush1.msra.mxu0 0.0
      %1488 = vmatprep.subr.mxu0 0.0
      %1489 = vmatpush1.msra.mxu0 0.0
      %1490 = vmatprep.subr.mxu0 0.0
      %1491 = vmatpush1.msra.mxu0 0.0
      %1492 = vmatprep.subr.mxu0 0.0
      %1493 = vmatpush1.msra.mxu0 0.0
      %1494 = vmatprep.subr.mxu0 0.0
      %1495 = vmatpush1.msra.mxu0 0.0
      %1496 = vmatprep.subr.mxu0 0.0
      %1497 = vmatpush1.msra.mxu0 0.0
      %1498 = vmatprep.subr.mxu0 0.0
      %1499 = vmatpush1.msra.mxu0 0.0
      %1500 = vmatprep.subr.mxu0 0.0
      %1501 = vmatpush1.msra.mxu0 0.0
      %1502 = vmatprep.subr.mxu0 0.0
      %1503 = vmatpush1.msra.mxu0 0.0
      %1504 = vmatprep.subr.mxu0 0.0
      %1505 = vmatpush1.msra.mxu0 0.0
      %1506 = vmatprep.subr.mxu0 0.0
      %1507 = vmatpush1.msra.mxu0 0.0
      %1508 = vmatprep.subr.mxu0 0.0
      %1509 = vmatpush1.msra.mxu0 0.0
      %1510 = vmatprep.subr.mxu0 0.0
      %1511 = vmatpush1.msra.mxu0 0.0
      %1512 = vmatprep.subr.mxu0 0.0
      %1513 = vmatpush1.msra.mxu0 0.0
      %1514 = vmatprep.subr.mxu0 0.0
      %1515 = vmatpush1.msra.mxu0 0.0
      %1516 = vmatprep.subr.mxu0 0.0
      %1517 = vmatpush1.msra.mxu0 0.0
      %1518 = vmatprep.subr.mxu0 0.0
      %1519 = vmatpush1.msra.mxu0 0.0
      %1520 = vmatprep.subr.mxu0 0.0
      %1521 = vmatpush1.msra.mxu0 0.0
      %1522 = vmatprep.subr.mxu0 0.0
      %1523 = vmatpush1.msra.mxu0 0.0
      %1524 = vmatprep.subr.mxu0 0.0
      %1525 = vmatpush1.msra.mxu0 0.0
      %1526 = vmatprep.subr.mxu0 0.0
      %1527 = vmatpush1.msra.mxu0 0.0
      %1528 = vmatprep.subr.mxu0 0.0
      %1529 = vmatpush1.msra.mxu0 0.0
      %1530 = vmatprep.subr.mxu0 0.0
      %1531 = vmatpush1.msra.mxu0 0.0
      %1532 = vmatprep.subr.mxu0 0.0
      %1533 = vmatpush1.msra.mxu0 0.0
      %1534 = vmatprep.mubr.f32.mxu0 0.0
      %1535 = vmatmul.mubr.f32.gmra.mrb[0].mxu0 %v1462
      %v1536 = vpop.f32.mrb[0].mxu0
      %v1537 = vadd.f32 0.0, %v1536
      %v1538 = vpop.f32.mrb[0].mxu0
      %v1539 = vadd.f32 0.0, %v1538
      %1540 = vdwg.mxu0
      %1541 = vmatprep.subr.mxu0 0.0
      %1542 = vmatpush1.msra.mxu0 %v1468
      %1543 = vmatprep.subr.mxu0 0.0
      %1544 = vmatpush1.msra.mxu0 0.0
      %1545 = vmatprep.subr.mxu0 0.0
      %1546 = vmatpush1.msra.mxu0 0.0
      %1547 = vmatprep.subr.mxu0 0.0
      %1548 = vmatpush1.msra.mxu0 0.0
      %1549 = vmatprep.subr.mxu0 0.0
      %1550 = vmatpush1.msra.mxu0 0.0
      %1551 = vmatprep.subr.mxu0 0.0
      %1552 = vmatpush1.msra.mxu0 0.0
      %1553 = vmatprep.subr.mxu0 0.0
      %1554 = vmatpush1.msra.mxu0 0.0
      %1555 = vmatprep.subr.mxu0 0.0
      %1556 = vmatpush1.msra.mxu0 0.0
      %1557 = vmatprep.subr.mxu0 0.0
      %1558 = vmatpush1.msra.mxu0 0.0
      %1559 = vmatprep.subr.mxu0 0.0
      %1560 = vmatpush1.msra.mxu0 0.0
      %1561 = vmatprep.subr.mxu0 0.0
      %1562 = vmatpush1.msra.mxu0 0.0
      %1563 = vmatprep.subr.mxu0 0.0
      %1564 = vmatpush1.msra.mxu0 0.0
      %1565 = vmatprep.subr.mxu0 0.0
      %1566 = vmatpush1.msra.mxu0 0.0
      %1567 = vmatprep.subr.mxu0 0.0
      %1568 = vmatpush1.msra.mxu0 0.0
      %1569 = vmatprep.subr.mxu0 0.0
      %1570 = vmatpush1.msra.mxu0 0.0
      %1571 = vmatprep.subr.mxu0 0.0
      %1572 = vmatpush1.msra.mxu0 0.0
      %1573 = vmatprep.subr.mxu0 0.0
      %1574 = vmatpush1.msra.mxu0 0.0
      %1575 = vmatprep.subr.mxu0 0.0
      %1576 = vmatpush1.msra.mxu0 0.0
      %1577 = vmatprep.subr.mxu0 0.0
      %1578 = vmatpush1.msra.mxu0 0.0
      %1579 = vmatprep.subr.mxu0 0.0
      %1580 = vmatpush1.msra.mxu0 0.0
      %1581 = vmatprep.subr.mxu0 0.0
      %1582 = vmatpush1.msra.mxu0 0.0
      %1583 = vmatprep.subr.mxu0 0.0
      %1584 = vmatpush1.msra.mxu0 0.0
      %1585 = vmatprep.subr.mxu0 0.0
      %1586 = vmatpush1.msra.mxu0 0.0
      %1587 = vmatprep.subr.mxu0 0.0
      %1588 = vmatpush1.msra.mxu0 0.0
      %1589 = vmatprep.subr.mxu0 0.0
      %1590 = vmatpush1.msra.mxu0 0.0
      %1591 = vmatprep.subr.mxu0 0.0
      %1592 = vmatpush1.msra.mxu0 0.0
      %1593 = vmatprep.subr.mxu0 0.0
      %1594 = vmatpush1.msra.mxu0 0.0
      %1595 = vmatprep.subr.mxu0 0.0
      %1596 = vmatpush1.msra.mxu0 0.0
      %1597 = vmatprep.subr.mxu0 0.0
      %1598 = vmatpush1.msra.mxu0 0.0
      %1599 = vmatprep.subr.mxu0 0.0
      %1600 = vmatpush1.msra.mxu0 0.0
      %1601 = vmatprep.subr.mxu0 0.0
      %1602 = vmatpush1.msra.mxu0 0.0
      %1603 = vmatprep.subr.mxu0 0.0
      %1604 = vmatpush1.msra.mxu0 0.0
      %1605 = vmatprep.mubr.f32.mxu0 0.0
      %1606 = vmatmul.mubr.f32.gmra.mrb[0].mxu0 %v1462
      %v1607 = vpop.f32.mrb[0].mxu0
      %v1608 = vadd.f32 0.0, %v1607
      %v1609 = vpop.f32.mrb[0].mxu0
      %1610 = vdwg.mxu0
      %v1611 = vadd.f32 %v1438, %v1537
      %v1612 = vadd.f32 %v1439, %v1539
      %v1613 = vadd.f32 %v1440, %v1608
      %v1614 = vld [vmem:[%s237] sm:$0xff]
      %v1615 = vld [vmem:[%s237 + $0x8] sm:$0xff]
      %s1616 = scalar_lea.vmem %s1, 16
      %v1617 = vld [vmem:[%s1616] sm:$0x3]
      %v1620 = vcombine.high %v1614, %v1614
      %v1621 = vcombine.high %v1615, %v1615
      %1622 = vrot.lane.b32.xlu0 %v1614, 90
      %v1623 = vpop.permute.xlu0 %1622
      %1624 = vrot.lane.b32.xlu0 %v1620, 90
      %v1625 = vpop.permute.xlu0 %1624
      %1626 = vrot.lane.b32.xlu0 %v1615, 90
      %v1627 = vpop.permute.xlu0 %1626
      %1628 = vrot.lane.b32.xlu0 %v1621, 90
      %v1629 = vpop.permute.xlu0 %1628
      %vm1630 = vcmask 736256
      %v1631 = vsel %vm1630, %v1623, %v1625
      %v1632 = vsel %vm1630, %v1625, %v1627
      %v1633 = vsel %vm1630, %v1627, %v1629
      %v1635 = vsel %vm271, %v1617, 0
      %v1637 = vsel %vm275, %v1631, 0
      %v1639 = vsel %vm275, %v1632, 0
      %v1641 = vsel %vm275, %v1633, 0
      %1643 = vmatprep.subr.mxu0 %v1639
      %1644 = vmatpush1.msra.mxu0 %v1637
      %1645 = vmatprep.subr.mxu0 0.0
      %1646 = vmatpush1.msra.mxu0 0.0
      %1647 = vmatprep.subr.mxu0 0.0
      %1648 = vmatpush1.msra.mxu0 0.0
      %1649 = vmatprep.subr.mxu0 0.0
      %1650 = vmatpush1.msra.mxu0 0.0
      %1651 = vmatprep.subr.mxu0 0.0
      %1652 = vmatpush1.msra.mxu0 0.0
      %1653 = vmatprep.subr.mxu0 0.0
      %1654 = vmatpush1.msra.mxu0 0.0
      %1655 = vmatprep.subr.mxu0 0.0
      %1656 = vmatpush1.msra.mxu0 0.0
      %1657 = vmatprep.subr.mxu0 0.0
      %1658 = vmatpush1.msra.mxu0 0.0
      %1659 = vmatprep.subr.mxu0 0.0
      %1660 = vmatpush1.msra.mxu0 0.0
      %1661 = vmatprep.subr.mxu0 0.0
      %1662 = vmatpush1.msra.mxu0 0.0
      %1663 = vmatprep.subr.mxu0 0.0
      %1664 = vmatpush1.msra.mxu0 0.0
      %1665 = vmatprep.subr.mxu0 0.0
      %1666 = vmatpush1.msra.mxu0 0.0
      %1667 = vmatprep.subr.mxu0 0.0
      %1668 = vmatpush1.msra.mxu0 0.0
      %1669 = vmatprep.subr.mxu0 0.0
      %1670 = vmatpush1.msra.mxu0 0.0
      %1671 = vmatprep.subr.mxu0 0.0
      %1672 = vmatpush1.msra.mxu0 0.0
      %1673 = vmatprep.subr.mxu0 0.0
      %1674 = vmatpush1.msra.mxu0 0.0
      %1675 = vmatprep.subr.mxu0 0.0
      %1676 = vmatpush1.msra.mxu0 0.0
      %1677 = vmatprep.subr.mxu0 0.0
      %1678 = vmatpush1.msra.mxu0 0.0
      %1679 = vmatprep.subr.mxu0 0.0
      %1680 = vmatpush1.msra.mxu0 0.0
      %1681 = vmatprep.subr.mxu0 0.0
      %1682 = vmatpush1.msra.mxu0 0.0
      %1683 = vmatprep.subr.mxu0 0.0
      %1684 = vmatpush1.msra.mxu0 0.0
      %1685 = vmatprep.subr.mxu0 0.0
      %1686 = vmatpush1.msra.mxu0 0.0
      %1687 = vmatprep.subr.mxu0 0.0
      %1688 = vmatpush1.msra.mxu0 0.0
      %1689 = vmatprep.subr.mxu0 0.0
      %1690 = vmatpush1.msra.mxu0 0.0
      %1691 = vmatprep.subr.mxu0 0.0
      %1692 = vmatpush1.msra.mxu0 0.0
      %1693 = vmatprep.subr.mxu0 0.0
      %1694 = vmatpush1.msra.mxu0 0.0
      %1695 = vmatprep.subr.mxu0 0.0
      %1696 = vmatpush1.msra.mxu0 0.0
      %1697 = vmatprep.subr.mxu0 0.0
      %1698 = vmatpush1.msra.mxu0 0.0
      %1699 = vmatprep.subr.mxu0 0.0
      %1700 = vmatpush1.msra.mxu0 0.0
      %1701 = vmatprep.subr.mxu0 0.0
      %1702 = vmatpush1.msra.mxu0 0.0
      %1703 = vmatprep.subr.mxu0 0.0
      %1704 = vmatpush1.msra.mxu0 0.0
      %1705 = vmatprep.subr.mxu0 0.0
      %1706 = vmatpush1.msra.mxu0 0.0
      %1707 = vmatprep.mubr.f32.mxu0 0.0
      %1708 = vmatmul.mubr.f32.gmra.mrb[0].mxu0 %v1635
      %v1709 = vpop.f32.mrb[0].mxu0
      %v1710 = vadd.f32 0.0, %v1709
      %v1711 = vpop.f32.mrb[0].mxu0
      %v1712 = vadd.f32 0.0, %v1711
      %1713 = vdwg.mxu0
      %1714 = vmatprep.subr.mxu0 0.0
      %1715 = vmatpush1.msra.mxu0 %v1641
      %1716 = vmatprep.subr.mxu0 0.0
      %1717 = vmatpush1.msra.mxu0 0.0
      %1718 = vmatprep.subr.mxu0 0.0
      %1719 = vmatpush1.msra.mxu0 0.0
      %1720 = vmatprep.subr.mxu0 0.0
      %1721 = vmatpush1.msra.mxu0 0.0
      %1722 = vmatprep.subr.mxu0 0.0
      %1723 = vmatpush1.msra.mxu0 0.0
      %1724 = vmatprep.subr.mxu0 0.0
      %1725 = vmatpush1.msra.mxu0 0.0
      %1726 = vmatprep.subr.mxu0 0.0
      %1727 = vmatpush1.msra.mxu0 0.0
      %1728 = vmatprep.subr.mxu0 0.0
      %1729 = vmatpush1.msra.mxu0 0.0
      %1730 = vmatprep.subr.mxu0 0.0
      %1731 = vmatpush1.msra.mxu0 0.0
      %1732 = vmatprep.subr.mxu0 0.0
      %1733 = vmatpush1.msra.mxu0 0.0
      %1734 = vmatprep.subr.mxu0 0.0
      %1735 = vmatpush1.msra.mxu0 0.0
      %1736 = vmatprep.subr.mxu0 0.0
      %1737 = vmatpush1.msra.mxu0 0.0
      %1738 = vmatprep.subr.mxu0 0.0
      %1739 = vmatpush1.msra.mxu0 0.0
      %1740 = vmatprep.subr.mxu0 0.0
      %1741 = vmatpush1.msra.mxu0 0.0
      %1742 = vmatprep.subr.mxu0 0.0
      %1743 = vmatpush1.msra.mxu0 0.0
      %1744 = vmatprep.subr.mxu0 0.0
      %1745 = vmatpush1.msra.mxu0 0.0
      %1746 = vmatprep.subr.mxu0 0.0
      %1747 = vmatpush1.msra.mxu0 0.0
      %1748 = vmatprep.subr.mxu0 0.0
      %1749 = vmatpush1.msra.mxu0 0.0
      %1750 = vmatprep.subr.mxu0 0.0
      %1751 = vmatpush1.msra.mxu0 0.0
      %1752 = vmatprep.subr.mxu0 0.0
      %1753 = vmatpush1.msra.mxu0 0.0
      %1754 = vmatprep.subr.mxu0 0.0
      %1755 = vmatpush1.msra.mxu0 0.0
      %1756 = vmatprep.subr.mxu0 0.0
      %1757 = vmatpush1.msra.mxu0 0.0
      %1758 = vmatprep.subr.mxu0 0.0
      %1759 = vmatpush1.msra.mxu0 0.0
      %1760 = vmatprep.subr.mxu0 0.0
      %1761 = vmatpush1.msra.mxu0 0.0
      %1762 = vmatprep.subr.mxu0 0.0
      %1763 = vmatpush1.msra.mxu0 0.0
      %1764 = vmatprep.subr.mxu0 0.0
      %1765 = vmatpush1.msra.mxu0 0.0
      %1766 = vmatprep.subr.mxu0 0.0
      %1767 = vmatpush1.msra.mxu0 0.0
      %1768 = vmatprep.subr.mxu0 0.0
      %1769 = vmatpush1.msra.mxu0 0.0
      %1770 = vmatprep.subr.mxu0 0.0
      %1771 = vmatpush1.msra.mxu0 0.0
      %1772 = vmatprep.subr.mxu0 0.0
      %1773 = vmatpush1.msra.mxu0 0.0
      %1774 = vmatprep.subr.mxu0 0.0
      %1775 = vmatpush1.msra.mxu0 0.0
      %1776 = vmatprep.subr.mxu0 0.0
      %1777 = vmatpush1.msra.mxu0 0.0
      %1778 = vmatprep.mubr.f32.mxu0 0.0
      %1779 = vmatmul.mubr.f32.gmra.mrb[0].mxu0 %v1635
      %v1780 = vpop.f32.mrb[0].mxu0
      %v1781 = vadd.f32 0.0, %v1780
      %v1782 = vpop.f32.mrb[0].mxu0
      %1783 = vdwg.mxu0
      %v1784 = vadd.f32 %v1611, %v1710
      %v1785 = vadd.f32 %v1612, %v1712
      %v1786 = vadd.f32 %v1613, %v1781
      %v1787 = vld [vmem:[%s2] sm:$0x3]
      %1789 = vset.pattern.permute.xlu0 0
      %1790 = vperm.xlu0 %1789, %v1787
      %v1791 = vpop.permute.xlu0 %1790
      %v1793 = vadd.f32 %v1784, %v1791
      %v1794 = vadd.f32 %v1785, %v1791
      %v1795 = vadd.f32 %v1786, %v1791
      %v1796 = vmax.f32 %v1793, 0.0
      %v1797 = vmax.f32 %v1794, 0.0
      %v1798 = vmax.f32 %v1795, 0.0
      %v1799 = vld [vmem:[%s3] sm:$0xff]
      %v1800 = vld [vmem:[%s4] sm:$0xff]
      %1802 = vset.pattern.permute.xlu0 0
      %1803 = vperm.xlu0 %1802, %v1800
      %v1804 = vpop.permute.xlu0 %1803
      %vm1806 = vcmask 15360
      %v1808 = vsel %vm1806, %v1799, 0
      %vm1810 = vcmask 1041408
      %v1812 = vsel %vm1810, %v1796, 0
      %v1815 = vsel %vm1810, %v1797, 0
      %v1818 = vsel %vm1810, %v1798, 0
      %1820 = vmatprep.subr.mxu0 %v1815
      %1821 = vmatpush1.msra.mxu0 %v1812
      %1822 = vmatprep.subr.mxu0 0.0
      %1823 = vmatpush1.msra.mxu0 0.0
      %1824 = vmatprep.subr.mxu0 0.0
      %1825 = vmatpush1.msra.mxu0 0.0
      %1826 = vmatprep.subr.mxu0 0.0
      %1827 = vmatpush1.msra.mxu0 0.0
      %1828 = vmatprep.subr.mxu0 0.0
      %1829 = vmatpush1.msra.mxu0 0.0
      %1830 = vmatprep.subr.mxu0 0.0
      %1831 = vmatpush1.msra.mxu0 0.0
      %1832 = vmatprep.subr.mxu0 0.0
      %1833 = vmatpush1.msra.mxu0 0.0
      %1834 = vmatprep.subr.mxu0 0.0
      %1835 = vmatpush1.msra.mxu0 0.0
      %1836 = vmatprep.subr.mxu0 0.0
      %1837 = vmatpush1.msra.mxu0 0.0
      %1838 = vmatprep.subr.mxu0 0.0
      %1839 = vmatpush1.msra.mxu0 0.0
      %1840 = vmatprep.subr.mxu0 0.0
      %1841 = vmatpush1.msra.mxu0 0.0
      %1842 = vmatprep.subr.mxu0 0.0
      %1843 = vmatpush1.msra.mxu0 0.0
      %1844 = vmatprep.subr.mxu0 0.0
      %1845 = vmatpush1.msra.mxu0 0.0
      %1846 = vmatprep.subr.mxu0 0.0
      %1847 = vmatpush1.msra.mxu0 0.0
      %1848 = vmatprep.subr.mxu0 0.0
      %1849 = vmatpush1.msra.mxu0 0.0
      %1850 = vmatprep.subr.mxu0 0.0
      %1851 = vmatpush1.msra.mxu0 0.0
      %1852 = vmatprep.subr.mxu0 0.0
      %1853 = vmatpush1.msra.mxu0 0.0
      %1854 = vmatprep.subr.mxu0 0.0
      %1855 = vmatpush1.msra.mxu0 0.0
      %1856 = vmatprep.subr.mxu0 0.0
      %1857 = vmatpush1.msra.mxu0 0.0
      %1858 = vmatprep.subr.mxu0 0.0
      %1859 = vmatpush1.msra.mxu0 0.0
      %1860 = vmatprep.subr.mxu0 0.0
      %1861 = vmatpush1.msra.mxu0 0.0
      %1862 = vmatprep.subr.mxu0 0.0
      %1863 = vmatpush1.msra.mxu0 0.0
      %1864 = vmatprep.subr.mxu0 0.0
      %1865 = vmatpush1.msra.mxu0 0.0
      %1866 = vmatprep.subr.mxu0 0.0
      %1867 = vmatpush1.msra.mxu0 0.0
      %1868 = vmatprep.subr.mxu0 0.0
      %1869 = vmatpush1.msra.mxu0 0.0
      %1870 = vmatprep.subr.mxu0 0.0
      %1871 = vmatpush1.msra.mxu0 0.0
      %1872 = vmatprep.subr.mxu0 0.0
      %1873 = vmatpush1.msra.mxu0 0.0
      %1874 = vmatprep.subr.mxu0 0.0
      %1875 = vmatpush1.msra.mxu0 0.0
      %1876 = vmatprep.subr.mxu0 0.0
      %1877 = vmatpush1.msra.mxu0 0.0
      %1878 = vmatprep.subr.mxu0 0.0
      %1879 = vmatpush1.msra.mxu0 0.0
      %1880 = vmatprep.subr.mxu0 0.0
      %1881 = vmatpush1.msra.mxu0 0.0
      %1882 = vmatprep.subr.mxu0 0.0
      %1883 = vmatpush1.msra.mxu0 0.0
      %1884 = vmatprep.mubr.f32.mxu0 0.0
      %1885 = vmatmul.mubr.f32.gmra.mrb[0].mxu0 %v1808
      %v1886 = vpop.f32.mrb[0].mxu0
      %v1887 = vadd.f32 %v1804, %v1886
      %v1888 = vpop.f32.mrb[0].mxu0
      %v1889 = vadd.f32 %v1804, %v1888
      %1890 = vdwg.mxu0
      %1891 = vmatprep.subr.mxu0 0.0
      %1892 = vmatpush1.msra.mxu0 %v1818
      %1893 = vmatprep.subr.mxu0 0.0
      %1894 = vmatpush1.msra.mxu0 0.0
      %1895 = vmatprep.subr.mxu0 0.0
      %1896 = vmatpush1.msra.mxu0 0.0
      %1897 = vmatprep.subr.mxu0 0.0
      %1898 = vmatpush1.msra.mxu0 0.0
      %1899 = vmatprep.subr.mxu0 0.0
      %1900 = vmatpush1.msra.mxu0 0.0
      %1901 = vmatprep.subr.mxu0 0.0
      %1902 = vmatpush1.msra.mxu0 0.0
      %1903 = vmatprep.subr.mxu0 0.0
      %1904 = vmatpush1.msra.mxu0 0.0
      %1905 = vmatprep.subr.mxu0 0.0
      %1906 = vmatpush1.msra.mxu0 0.0
      %1907 = vmatprep.subr.mxu0 0.0
      %1908 = vmatpush1.msra.mxu0 0.0
      %1909 = vmatprep.subr.mxu0 0.0
      %1910 = vmatpush1.msra.mxu0 0.0
      %1911 = vmatprep.subr.mxu0 0.0
      %1912 = vmatpush1.msra.mxu0 0.0
      %1913 = vmatprep.subr.mxu0 0.0
      %1914 = vmatpush1.msra.mxu0 0.0
      %1915 = vmatprep.subr.mxu0 0.0
      %1916 = vmatpush1.msra.mxu0 0.0
      %1917 = vmatprep.subr.mxu0 0.0
      %1918 = vmatpush1.msra.mxu0 0.0
      %1919 = vmatprep.subr.mxu0 0.0
      %1920 = vmatpush1.msra.mxu0 0.0
      %1921 = vmatprep.subr.mxu0 0.0
      %1922 = vmatpush1.msra.mxu0 0.0
      %1923 = vmatprep.subr.mxu0 0.0
      %1924 = vmatpush1.msra.mxu0 0.0
      %1925 = vmatprep.subr.mxu0 0.0
      %1926 = vmatpush1.msra.mxu0 0.0
      %1927 = vmatprep.subr.mxu0 0.0
      %1928 = vmatpush1.msra.mxu0 0.0
      %1929 = vmatprep.subr.mxu0 0.0
      %1930 = vmatpush1.msra.mxu0 0.0
      %1931 = vmatprep.subr.mxu0 0.0
      %1932 = vmatpush1.msra.mxu0 0.0
      %1933 = vmatprep.subr.mxu0 0.0
      %1934 = vmatpush1.msra.mxu0 0.0
      %1935 = vmatprep.subr.mxu0 0.0
      %1936 = vmatpush1.msra.mxu0 0.0
      %1937 = vmatprep.subr.mxu0 0.0
      %1938 = vmatpush1.msra.mxu0 0.0
      %1939 = vmatprep.subr.mxu0 0.0
      %1940 = vmatpush1.msra.mxu0 0.0
      %1941 = vmatprep.subr.mxu0 0.0
      %1942 = vmatpush1.msra.mxu0 0.0
      %1943 = vmatprep.subr.mxu0 0.0
      %1944 = vmatpush1.msra.mxu0 0.0
      %1945 = vmatprep.subr.mxu0 0.0
      %1946 = vmatpush1.msra.mxu0 0.0
      %1947 = vmatprep.subr.mxu0 0.0
      %1948 = vmatpush1.msra.mxu0 0.0
      %1949 = vmatprep.subr.mxu0 0.0
      %1950 = vmatpush1.msra.mxu0 0.0
      %1951 = vmatprep.subr.mxu0 0.0
      %1952 = vmatpush1.msra.mxu0 0.0
      %1953 = vmatprep.subr.mxu0 0.0
      %1954 = vmatpush1.msra.mxu0 0.0
      %1955 = vmatprep.mubr.f32.mxu0 0.0
      %1956 = vmatmul.mubr.f32.gmra.mrb[0].mxu0 %v1808
      %v1957 = vpop.f32.mrb[0].mxu0
      %v1958 = vadd.f32 %v1804, %v1957
      %v1959 = vpop.f32.mrb[0].mxu0
      %1960 = vdwg.mxu0
      %v1961 = vmax.f32 %v1887, 0.0
      %v1962 = vmax.f32 %v1889, 0.0
      %v1963 = vmax.f32 %v1958, 0.0
      %1964 = vst [vmem:[%s246] sm:$0xff] %v1961
      %1965 = vst [vmem:[%s246 + $0x8] sm:$0xff] %v1962
      %1966 = vst [vmem:[%s246 + $0x10] sm:$0xff] %v1963
      %s1967 = smul.u32 3, %s21
      %p1968 = scmp.lt.s32.totalorder %s20, 1
      %s1969 = scalar_select %p1968, %s20, 1
      %p1970 = scmp.lt.s32.totalorder %s1967, 2
      %s1971 = scalar_select %p1970, %s1967, 2
      %s1972 = smul.addr %s1969, 3
      %s1973 = sadd.s32 %s1971, %s1972
      %s1974 = smul.addr %s1973, 8
      %s1975 = scalar_lea.vmem %s5, %s1974
      // Predicated region
      $region41: #{dense_block_light.1} parent=39 // pred_check
        %p1976 = pneg %p158
      $region42: #{dense_block_light.1} parent=39 // pred_check_branch
        %1978 = sbr.rel (%p1976) target = $region44
      $region43: #{dense_block_light.1} parent=39 // pred_region
        %s1979 = smul.u32 3, %s21
      $region44: #{dense_block_light.1} parent=39 // pred_fallthru
        _
    $region40: #{dense_block_light.1} parent=5 // pred_fallthru
      _
    %p1980 = scmp.le.s32.totalorder 2, %s11
    // Predicated region
    $region45: #{dense_block_light.1} parent=5 // pred_check
      %p1981 = pneg %p1980
    $region46: #{dense_block_light.1} parent=5 // pred_check_branch
      %1983 = sbr.rel (%p1981) target = $region48
    $region47: #{dense_block_light.1} parent=5 // pred_region
      %s1984 = ssub.s32 %s11, 2
      // Predicated region
      $region49: #{dense_block_light.1} parent=47 // pred_check
        %p1985 = pneg %p164
      $region50: #{dense_block_light.1} parent=47 // pred_check_branch
        %1987 = sbr.rel (%p1985) target = $region52
      $region51: #{dense_block_light.1} parent=47 // pred_region
        %s1988 = smul.u32 3, %s23
        %p1989 = scmp.lt.s32.totalorder %s22, 1
        %s1990 = scalar_select %p1989, %s22, 1
        %p1991 = scmp.lt.s32.totalorder %s1988, 2
        %s1992 = scalar_select %p1991, %s1988, 2
        %s1993 = smul.addr %s1990, 3
        %s1994 = sadd.s32 %s1992, %s1993
        %s1995 = smul.addr %s1994, 8
        %s1996 = scalar_lea.vmem %s5, %s1995
      $region52: #{dense_block_light.1} parent=47 // pred_fallthru
        _
    $region48: #{dense_block_light.1} parent=5 // pred_fallthru
      _
  $region6: #{dense_block_light.1} parent=0 // loop_footer
    %s15 = sadd.s32 1, %s11
  $region7: #{dense_block_light.1} parent=0 // loop_footer_branch
    %10 = sbr.rel target = $region3
  $region8: #{dense_block_light.1} parent=0 // loop_exit
    _

</llo_original>
